<compile_context>
chip_gen: v7x
topology: tpu7x:2x2x1
jax: 0.10.0
libtpu: 0.0.40
codegen_flags: <defaults>
</compile_context>

<pallas_src>
import functools

import numpy as np
import jax
import jax.numpy as jnp
from jax import lax
from jax.experimental import pallas as pl
from jax.experimental.pallas import tpu as pltpu


def _modal_selector_kernel(x_ref, wbd_ref, bbd_ref, w1_ref, b1_ref, w2_ref, b2_ref,
                           out_ref, xn_ref, stats_ref, *,
                           num_modals, col_tile, row_chunk, n_row_chunks):
    # Grid axes: (g = column split, b = batch, m = modal, j = column tile)
    # x_ref     : (1, 1, C, N)      current (batch, modal) feature map, channels on sublanes
    # out_ref   : (1, M, N_local)   resident output block for this (batch, column split)
    # xn_ref    : (C, N)            VMEM scratch: normalized features of the current modal
    # stats_ref : (4M, N_local)     VMEM scratch: rows 4m+[0..3] = [mean, var, max, min]
    g = pl.program_id(0)
    m = pl.program_id(2)
    j = pl.program_id(3)
    M = num_modals
    C, N = xn_ref.shape
    n_local = out_ref.shape[2]
    tn = col_tile

    col_local = pl.multiple_of(j * tn, tn)                       # offset inside this core's slice
    col_global = pl.multiple_of(g * n_local + j * tn, tn)        # offset inside the full N axis

    # ---- normalize once per (g, b, m): xn = x / max(||x||_2, 1e-12)   (F.normalize) ----
    @pl.when(j == 0)
    def _():
        x = x_ref[0, 0]                                          # (C, N) f32
        ssq = jnp.sum(x * x, axis=0, keepdims=True)              # (1, N)
        xn_ref[...] = x * lax.rsqrt(jnp.maximum(ssq, 1e-24))     # rsqrt -> EUP slot

    # ---- single-pass chunked stats over the "other pixel" axis ----
    # Slab orientation (other_pixels, cols): sublane-axis reductions give lane-dense rows.
    xn_cols = xn_ref[:, pl.ds(col_global, tn)]                   # (C, tn)

    def slab_stats(r0):
        others = xn_ref[:, pl.ds(r0, row_chunk)]                 # (C, R)
        # TODO(synk): if the Mosaic dump shows a per-tile relayout on the dim-0-contracting
        #             operands, pre-transpose xn once per (b, m) instead.
        s_blk = lax.dot_general(
            others, xn_cols,
            dimension_numbers=(((0,), (0,)), ((), ())),
            preferred_element_type=jnp.float32)                  # (R, tn) == S[rows, cols]
        return (jnp.sum(s_blk, axis=0, keepdims=True),
                jnp.sum(s_blk * s_blk, axis=0, keepdims=True),
                jnp.max(s_blk, axis=0, keepdims=True),
                jnp.min(s_blk, axis=0, keepdims=True))

    if n_row_chunks == 1:
        s_sum, s_sumsq, s_max, s_min = slab_stats(0)
    else:
        def chunk_body(r_idx, carry):
            ps, pq, pmx, pmn = slab_stats(pl.multiple_of(r_idx * row_chunk, row_chunk))
            return (carry[0] + ps, carry[1] + pq,
                    jnp.maximum(carry[2], pmx), jnp.minimum(carry[3], pmn))
        init = (jnp.zeros((1, tn), jnp.float32),
                jnp.zeros((1, tn), jnp.float32),
                jnp.full((1, tn), -jnp.inf, jnp.float32),
                jnp.full((1, tn), jnp.inf, jnp.float32))
        s_sum, s_sumsq, s_max, s_min = lax.fori_loop(
            0, n_row_chunks, chunk_body, init, unroll=(n_row_chunks <= 8))

    mean = s_sum * (1.0 / N)
    var = (s_sumsq - s_sum * mean) * (1.0 / (N - 1))             # unbiased (torch.var default)

    # ---- scatter into the flat (4M, N_local) stats slab (static sublane offsets) ----
    for mm in range(M):                                          # exactly one branch taken
        @pl.when(m == mm)
        def _(mm=mm):
            stats_ref[pl.ds(4 * mm + 0, 1), pl.ds(col_local, tn)] = mean
            stats_ref[pl.ds(4 * mm + 1, 1), pl.ds(col_local, tn)] = var
            stats_ref[pl.ds(4 * mm + 2, 1), pl.ds(col_local, tn)] = s_max
            stats_ref[pl.ds(4 * mm + 3, 1), pl.ds(col_local, tn)] = s_min

    # ---- once all modals' stats for this column tile exist: 1x1 convs + softmax ----
    @pl.when(m == M - 1)
    def _():
        stats_blk = stats_ref[:, pl.ds(col_local, tn)]           # (4M, tn), contiguous
        # per-modal Conv2d(4,4,1)+ReLU as a block-diagonal (4M,4M) matmul
        y0 = jnp.maximum(
            jnp.dot(wbd_ref[...], stats_blk, preferred_element_type=jnp.float32)
            + bbd_ref[...], 0.0)
        # channel_mixer: Conv2d(4M,16M,1) -> ReLU -> Conv2d(16M,M,1)
        y1 = jnp.maximum(
            jnp.dot(w1_ref[...], y0, preferred_element_type=jnp.float32)
            + b1_ref[...], 0.0)
        y2 = jnp.dot(w2_ref[...], y1, preferred_element_type=jnp.float32) + b2_ref[...]
        # softmax over the modal axis
        z = y2 - jnp.max(y2, axis=0, keepdims=True)
        e = jnp.exp(z)
        inv = pl.reciprocal(jnp.sum(e, axis=0, keepdims=True), approx=True)   # EUP slot
        out_ref[0, :, pl.ds(col_local, tn)] = e * inv


def _pick_col_tile(N, requested=None):
    """Column-tile size: a multiple of 128 dividing N (largest of a few candidates)."""
    if requested is not None and N % requested == 0:
        return requested
    if N % 128 != 0:
        return N                               # fall back to a single column tile
    for cand in (2048, 1024, 512, 256, 128):
        if cand <= N and N % cand == 0:
            return cand
    return N


def _pick_row_chunk(N, tn, cap_bytes=2 * 1024 * 1024):
    """'Other pixel' chunk so the (R, tn) f32 similarity slab stays <= cap_bytes."""
    max_rows = max(128, cap_bytes // (4 * tn))
    if N <= max_rows:
        return N
    r = (max_rows // 128) * 128
    while r >= 128:
        if N % r == 0:
            return r
        r -= 128
    r = (max_rows // 8) * 8
    while r >= 8:
        if N % r == 0:
            return r
        r -= 8
    return N


def _vmem_capacity_bytes():
    try:
        return int(pltpu.get_tpu_info().vmem_capacity_bytes)
    except Exception:
        return 64 * 1024 * 1024                # conservative: v7x per-core VMEM


def _vmem_limit_bytes(M, C, N, n_local, tn, row_chunk):
    """Footprint-derived scoped-VMEM limit (instead of a hardcoded number)."""
    f32 = 4
    footprint = (
        C * N * f32                             # xn scratch
        + 4 * M * n_local * f32                 # stats scratch
        + 2 * C * N * f32                       # double-buffered (1,1,C,N) input block
        + 2 * M * n_local * f32                 # double-buffered (1,M,N_local) output block
        + 2 * row_chunk * tn * f32              # similarity chunk + its elementwise temps
        + 3 * (4 * M + 16 * M + M) * tn * f32   # epilogue temporaries (generous)
        + 2 * f32 * (96 * M * M + 21 * M))      # weights + biases
    limit = max(32 * 1024 * 1024, int(footprint * 1.5) + (8 << 20))
    return min(limit, _vmem_capacity_bytes() - (8 << 20))


def modal_selector(x_list, params, *, col_tile=None, col_split=None):
    """x_list: list of M NCHW arrays (B, C, H, W). Returns (B, M, H, W) modal weights."""
    B, C, H, W = x_list[0].shape
    M = len(x_list)
    N = H * W
    # NCHW -> (B, M, C, N): pure reshape + stack, no transpose (N stays on lanes).
    xs = jnp.stack([xi.reshape(B, C, N) for xi in x_list], axis=1)

    wbd, bbd, w1, b1, w2, b2 = params
    tn = _pick_col_tile(N, col_tile)
    n_col_tiles = N // tn

    # Megacore (v7x): if the batch axis alone cannot feed 2 TensorCores, split the column
    # range across a leading parallel axis (xn is recomputed per half, which is cheap).
    if col_split is None:
        col_split = 2 if (B < 2 and n_col_tiles % 2 == 0) else 1
    assert n_col_tiles % col_split == 0
    n_local = N // col_split
    n_col_tiles_local = n_col_tiles // col_split

    row_chunk = _pick_row_chunk(N, tn)
    n_row_chunks = N // row_chunk

    kernel = functools.partial(
        _modal_selector_kernel, num_modals=M, col_tile=tn,
        row_chunk=row_chunk, n_row_chunks=n_row_chunks)

    flops = (2 * B * M * N * N * C                                   # similarity matmuls
             + 6 * B * M * N * N                                     # one-pass stats (VALU)
             + 2 * B * N * (16 * M * M + 64 * M * M + 16 * M * M)    # 1x1 convs
             + 4 * B * M * C * N)                                    # normalize
    transcendentals = 2 * B * M * N + B * N                          # rsqrt + exp + reciprocal
    bytes_accessed = 4 * (col_split * B * M * C * N                  # input reads
                          + B * M * N                                # output writeback
                          + 96 * M * M + 21 * M)                     # weights + biases

    out = pl.pallas_call(
        kernel,
        out_shape=jax.ShapeDtypeStruct((B, M, N), jnp.float32),
        grid_spec=pltpu.PrefetchScalarGridSpec(
            num_scalar_prefetch=0,
            grid=(col_split, B, M, n_col_tiles_local),
            in_specs=[
                pl.BlockSpec((1, 1, C, N), lambda g, b, m, j: (b, m, 0, 0)),
                pl.BlockSpec((4 * M, 4 * M), lambda g, b, m, j: (0, 0)),
                pl.BlockSpec((4 * M, 1), lambda g, b, m, j: (0, 0)),
                pl.BlockSpec((16 * M, 4 * M), lambda g, b, m, j: (0, 0)),
                pl.BlockSpec((16 * M, 1), lambda g, b, m, j: (0, 0)),
                pl.BlockSpec((M, 16 * M), lambda g, b, m, j: (0, 0)),
                pl.BlockSpec((M, 1), lambda g, b, m, j: (0, 0)),
            ],
            out_specs=pl.BlockSpec((1, M, n_local), lambda g, b, m, j: (b, 0, g)),
            scratch_shapes=[
                pltpu.VMEM((C, N), jnp.float32),            # normalized x of current modal
                pltpu.VMEM((4 * M, n_local), jnp.float32),  # flat [mean,var,max,min] rows
            ],
        ),
        compiler_params=pltpu.CompilerParams(
            dimension_semantics=("parallel", "parallel", "arbitrary", "arbitrary"),
            vmem_limit_bytes=_vmem_limit_bytes(M, C, N, n_local, tn, row_chunk),
        ),
        cost_estimate=pl.CostEstimate(
            flops=flops, transcendentals=transcendentals, bytes_accessed=bytes_accessed),
    )(xs, wbd, bbd, w1, b1, w2, b2)

    return out.reshape(B, M, H, W)


def init_params(key, num_modals=4):
    """Deterministic synthetic parameters (shapes match the PyTorch module's 1x1 convs)."""
    M = num_modals
    k = jax.random.split(key, 6)
    # simi_projs[i][1]: Conv2d(4, 4, 1) per modal -> block-diagonal (4M, 4M)
    w_proj = jax.random.normal(k[0], (M, 4, 4), jnp.float32) * 0.3
    b_proj = jax.random.normal(k[1], (M, 4), jnp.float32) * 0.1
    wbd = jax.scipy.linalg.block_diag(*[w_proj[i] for i in range(M)]).astype(jnp.float32)
    bbd = b_proj.reshape(4 * M, 1)
    # channel_mixer: Conv2d(4M, 16M, 1) -> ReLU -> Conv2d(16M, M, 1)
    w1 = jax.random.normal(k[2], (16 * M, 4 * M), jnp.float32) * 0.1
    b1 = jax.random.normal(k[3], (16 * M, 1), jnp.float32) * 0.1
    w2 = jax.random.normal(k[4], (M, 16 * M), jnp.float32) * 0.1
    b2 = jax.random.normal(k[5], (M, 1), jnp.float32) * 0.1
    return (wbd, bbd, w1, b1, w2, b2)


def reference(x_list, params):
    """Pure-JAX reference mirroring the PyTorch forward (sr_ratio=1)."""
    wbd, bbd, w1, b1, w2, b2 = params
    B, C, H, W = x_list[0].shape
    N = H * W
    stats_all = []
    for xi in x_list:
        xf = xi.reshape(B, C, N)
        xn = xf / jnp.maximum(jnp.sqrt(jnp.sum(xf ** 2, axis=1, keepdims=True)), 1e-12)
        s = jnp.einsum('bcn,bcm->bnm', xn, xn, precision=jax.lax.Precision.HIGHEST)  # (B,N,N)
        mean = jnp.mean(s, axis=1)
        var = jnp.var(s, axis=1, ddof=1)
        mx = jnp.max(s, axis=1)
        mn = jnp.min(s, axis=1)
        stats_all.append(jnp.stack([mean, var, mx, mn], axis=1))       # (B, 4, N)
    stats = jnp.concatenate(stats_all, axis=1)                         # (B, 4M, N)
    y0 = jax.nn.relu(jnp.einsum('oc,bcn->bon', wbd, stats,
                                precision=jax.lax.Precision.HIGHEST) + bbd[None])
    y1 = jax.nn.relu(jnp.einsum('oc,bcn->bon', w1, y0,
                                precision=jax.lax.Precision.HIGHEST) + b1[None])
    y2 = jnp.einsum('oc,bcn->bon', w2, y1,
                    precision=jax.lax.Precision.HIGHEST) + b2[None]
    out = jax.nn.softmax(y2, axis=1)
    return out.reshape(B, -1, H, W)


if __name__ == "__main__":
    key = jax.random.PRNGKey(0)
    B, C, H, W, M = 2, 32, 16, 16, 4          # embed_dims=32, num_modals=4, sr_ratio=1
    kx, kp = jax.random.split(key)
    xkeys = jax.random.split(kx, M)
    x_list = [jax.random.normal(xkeys[i], (B, C, H, W), jnp.float32) for i in range(M)]
    params = init_params(kp, num_modals=M)

    # col_tile=128 -> two column tiles, exercising the tiled / accumulating path.
    out = modal_selector(x_list, params, col_tile=128)
    out = jax.block_until_ready(out)
    assert out.shape == (B, M, H, W)
    ref = reference(x_list, params)
    np.testing.assert_allclose(np.asarray(out), np.asarray(ref), atol=2e-3, rtol=2e-3)

    # B=1 call: exercises the column-split (megacore) leading grid axis.
    x1_list = [xi[:1] for xi in x_list]
    out1 = modal_selector(x1_list, params, col_tile=128)
    out1 = jax.block_until_ready(out1)
    ref1 = reference(x1_list, params)
    np.testing.assert_allclose(np.asarray(out1), np.asarray(ref1), atol=2e-3, rtol=2e-3)

    print("KERNEL_OK")
</pallas_src>

<mosaic_0001>
module attributes {stable_mosaic.version = 11 : i64} {
  func.func @_modal_selector_kernel(%arg0: i32, %arg1: i32, %arg2: i32, %arg3: i32, %arg4: memref<1x1x32x256xf32, #tpu.memory_space<vmem>>, %arg5: memref<16x16xf32, #tpu.memory_space<vmem>>, %arg6: memref<16x1xf32, #tpu.memory_space<vmem>>, %arg7: memref<64x16xf32, #tpu.memory_space<vmem>>, %arg8: memref<64x1xf32, #tpu.memory_space<vmem>>, %arg9: memref<4x64xf32, #tpu.memory_space<vmem>>, %arg10: memref<4x1xf32, #tpu.memory_space<vmem>>, %arg11: memref<1x4x256xf32, #tpu.memory_space<vmem>>, %arg12: memref<32x256xf32, #tpu.memory_space<vmem>>, %arg13: memref<16x256xf32, #tpu.memory_space<vmem>>) attributes {dimension_semantics = [#tpu.dimension_semantics<parallel>, #tpu.dimension_semantics<parallel>, #tpu.dimension_semantics<arbitrary>, #tpu.dimension_semantics<arbitrary>], iteration_bounds = array<i64: 1, 2, 4, 2>, scalar_prefetch = 0 : i64, scratch_operands = 2 : i64, tpu.core_type = #tpu.core_type<tc>, window_params = [{transform_indices = @transform_0, window_bounds = array<i64: 1, 1, 32, 256>}, {pipeline_mode = #tpu.pipeline_mode<synchronous>, transform_indices = @transform_1, window_bounds = array<i64: 16, 16>}, {pipeline_mode = #tpu.pipeline_mode<synchronous>, transform_indices = @transform_2, window_bounds = array<i64: 16, 1>}, {pipeline_mode = #tpu.pipeline_mode<synchronous>, transform_indices = @transform_3, window_bounds = array<i64: 64, 16>}, {pipeline_mode = #tpu.pipeline_mode<synchronous>, transform_indices = @transform_4, window_bounds = array<i64: 64, 1>}, {pipeline_mode = #tpu.pipeline_mode<synchronous>, transform_indices = @transform_5, window_bounds = array<i64: 4, 64>}, {pipeline_mode = #tpu.pipeline_mode<synchronous>, transform_indices = @transform_6, window_bounds = array<i64: 4, 1>}, {transform_indices = @transform_7, window_bounds = array<i64: 1, 4, 256>}]} {
    %c128_i32 = arith.constant 128 : i32
    %0 = arith.muli %arg3, %c128_i32 : i32
    %1 = tpu.assume_multiple %0, 128 : i32
    %c256_i32 = arith.constant 256 : i32
    %2 = arith.muli %arg0, %c256_i32 : i32
    %c128_i32_0 = arith.constant 128 : i32
    %3 = arith.muli %arg3, %c128_i32_0 : i32
    %4 = arith.addi %2, %3 : i32
    %5 = tpu.assume_multiple %4, 128 : i32
    %c0_i32 = arith.constant 0 : i32
    %6 = arith.cmpi eq, %arg3, %c0_i32 : i32
    %7 = arith.extui %6 : i1 to i32
    %c0_i32_1 = arith.constant 0 : i32
    %8 = arith.cmpi ne, %7, %c0_i32_1 : i32
    scf.if %8 {
      %c0_17 = arith.constant 0 : index
      %c0_18 = arith.constant 0 : index
      %c0_19 = arith.constant 0 : index
      %c0_20 = arith.constant 0 : index
      %43 = vector.load %arg4[%c0_17, %c0_18, %c0_19, %c0_20] : memref<1x1x32x256xf32, #tpu.memory_space<vmem>>, vector<1x1x32x256xf32>
      %44 = vector.shape_cast %43 : vector<1x1x32x256xf32> to vector<32x256xf32>
      %45 = arith.mulf %44, %44 : vector<32x256xf32>
      %cst_21 = arith.constant dense<0.000000e+00> : vector<256xf32>
      %46 = vector.multi_reduction <add>, %45, %cst_21 [0] : vector<32x256xf32> to vector<256xf32>
      %47 = vector.shape_cast %46 : vector<256xf32> to vector<1x256xf32>
      %cst_22 = arith.constant 1.000000e-24 : f32
      %48 = vector.broadcast %cst_22 : f32 to vector<1x256xf32>
      %49 = arith.maximumf %47, %48 : vector<1x256xf32>
      %50 = math.rsqrt %49 : vector<1x256xf32>
      %51 = vector.broadcast %50 : vector<1x256xf32> to vector<32x256xf32>
      %52 = arith.mulf %44, %51 : vector<32x256xf32>
      %c0_23 = arith.constant 0 : index
      %c0_24 = arith.constant 0 : index
      %53 = vector.load %arg12[%c0_23, %c0_24] : memref<32x256xf32, #tpu.memory_space<vmem>>, vector<32x256xf32>
      tpu.vector_store %arg12[%c0_23, %c0_24], %52 {strides = array<i32>} : memref<32x256xf32, #tpu.memory_space<vmem>>, vector<32x256xf32>,
    } else {
    }
    %c0 = arith.constant 0 : index
    %9 = arith.index_cast %5 : i32 to index
    %10 = vector.load %arg12[%c0, %9] : memref<32x256xf32, #tpu.memory_space<vmem>>, vector<32x128xf32>
    %c0_2 = arith.constant 0 : index
    %c0_3 = arith.constant 0 : index
    %11 = vector.load %arg12[%c0_2, %c0_3] : memref<32x256xf32, #tpu.memory_space<vmem>>, vector<32x256xf32>
    %cst = arith.constant dense<0.000000e+00> : vector<256x128xf32>
    %12 = tpu.matmul %11, %10, %cst {dimension_numbers = #tpu.dot_dimension_numbers<[0], [0], [1], [1], [0, 1, 1, 1], [], []>} : vector<32x256xf32>, vector<32x128xf32>, vector<256x128xf32> -> vector<256x128xf32>
    %cst_4 = arith.constant dense<0.000000e+00> : vector<128xf32>
    %13 = vector.multi_reduction <add>, %12, %cst_4 [0] : vector<256x128xf32> to vector<128xf32>
    %14 = vector.shape_cast %13 : vector<128xf32> to vector<1x128xf32>
    %15 = arith.mulf %12, %12 : vector<256x128xf32>
    %cst_5 = arith.constant dense<0.000000e+00> : vector<128xf32>
    %16 = vector.multi_reduction <add>, %15, %cst_5 [0] : vector<256x128xf32> to vector<128xf32>
    %17 = vector.shape_cast %16 : vector<128xf32> to vector<1x128xf32>
    %cst_6 = arith.constant dense<0xFF800000> : vector<128xf32>
    %18 = vector.multi_reduction <maximumf>, %12, %cst_6 [0] : vector<256x128xf32> to vector<128xf32>
    %19 = vector.shape_cast %18 : vector<128xf32> to vector<1x128xf32>
    %cst_7 = arith.constant dense<0x7F800000> : vector<128xf32>
    %20 = vector.multi_reduction <minimumf>, %12, %cst_7 [0] : vector<256x128xf32> to vector<128xf32>
    %21 = vector.shape_cast %20 : vector<128xf32> to vector<1x128xf32>
    %cst_8 = arith.constant 3.906250e-03 : f32
    %22 = vector.broadcast %cst_8 : f32 to vector<1x128xf32>
    %23 = arith.mulf %14, %22 : vector<1x128xf32>
    %24 = arith.mulf %14, %23 : vector<1x128xf32>
    %25 = arith.subf %17, %24 : vector<1x128xf32>
    %cst_9 = arith.constant 0.00392156886 : f32
    %26 = vector.broadcast %cst_9 : f32 to vector<1x128xf32>
    %27 = arith.mulf %25, %26 : vector<1x128xf32>
    %c0_i32_10 = arith.constant 0 : i32
    %28 = arith.cmpi eq, %arg2, %c0_i32_10 : i32
    %29 = arith.extui %28 : i1 to i32
    %c0_i32_11 = arith.constant 0 : i32
    %30 = arith.cmpi ne, %29, %c0_i32_11 : i32
    scf.if %30 {
      %c0_17 = arith.constant 0 : index
      %43 = arith.index_cast %1 : i32 to index
      %44 = vector.load %arg13[%c0_17, %43] : memref<16x256xf32, #tpu.memory_space<vmem>>, vector<1x128xf32>
      tpu.vector_store %arg13[%c0_17, %43], %23 {strides = array<i32>} : memref<16x256xf32, #tpu.memory_space<vmem>>, vector<1x128xf32>,
      %c1 = arith.constant 1 : index
      %45 = arith.index_cast %1 : i32 to index
      %46 = vector.load %arg13[%c1, %45] : memref<16x256xf32, #tpu.memory_space<vmem>>, vector<1x128xf32>
      tpu.vector_store %arg13[%c1, %45], %27 {strides = array<i32>} : memref<16x256xf32, #tpu.memory_space<vmem>>, vector<1x128xf32>,
      %c2 = arith.constant 2 : index
      %47 = arith.index_cast %1 : i32 to index
      %48 = vector.load %arg13[%c2, %47] : memref<16x256xf32, #tpu.memory_space<vmem>>, vector<1x128xf32>
      tpu.vector_store %arg13[%c2, %47], %19 {strides = array<i32>} : memref<16x256xf32, #tpu.memory_space<vmem>>, vector<1x128xf32>,
      %c3 = arith.constant 3 : index
      %49 = arith.index_cast %1 : i32 to index
      %50 = vector.load %arg13[%c3, %49] : memref<16x256xf32, #tpu.memory_space<vmem>>, vector<1x128xf32>
      tpu.vector_store %arg13[%c3, %49], %21 {strides = array<i32>} : memref<16x256xf32, #tpu.memory_space<vmem>>, vector<1x128xf32>,
    } else {
    }
    %c1_i32 = arith.constant 1 : i32
    %31 = arith.cmpi eq, %arg2, %c1_i32 : i32
    %32 = arith.extui %31 : i1 to i32
    %c0_i32_12 = arith.constant 0 : i32
    %33 = arith.cmpi ne, %32, %c0_i32_12 : i32
    scf.if %33 {
      %c4 = arith.constant 4 : index
      %43 = arith.index_cast %1 : i32 to index
      %44 = vector.load %arg13[%c4, %43] : memref<16x256xf32, #tpu.memory_space<vmem>>, vector<1x128xf32>
      tpu.vector_store %arg13[%c4, %43], %23 {strides = array<i32>} : memref<16x256xf32, #tpu.memory_space<vmem>>, vector<1x128xf32>,
      %c5 = arith.constant 5 : index
      %45 = arith.index_cast %1 : i32 to index
      %46 = vector.load %arg13[%c5, %45] : memref<16x256xf32, #tpu.memory_space<vmem>>, vector<1x128xf32>
      tpu.vector_store %arg13[%c5, %45], %27 {strides = array<i32>} : memref<16x256xf32, #tpu.memory_space<vmem>>, vector<1x128xf32>,
      %c6 = arith.constant 6 : index
      %47 = arith.index_cast %1 : i32 to index
      %48 = vector.load %arg13[%c6, %47] : memref<16x256xf32, #tpu.memory_space<vmem>>, vector<1x128xf32>
      tpu.vector_store %arg13[%c6, %47], %19 {strides = array<i32>} : memref<16x256xf32, #tpu.memory_space<vmem>>, vector<1x128xf32>,
      %c7 = arith.constant 7 : index
      %49 = arith.index_cast %1 : i32 to index
      %50 = vector.load %arg13[%c7, %49] : memref<16x256xf32, #tpu.memory_space<vmem>>, vector<1x128xf32>
      tpu.vector_store %arg13[%c7, %49], %21 {strides = array<i32>} : memref<16x256xf32, #tpu.memory_space<vmem>>, vector<1x128xf32>,
    } else {
    }
    %c2_i32 = arith.constant 2 : i32
    %34 = arith.cmpi eq, %arg2, %c2_i32 : i32
    %35 = arith.extui %34 : i1 to i32
    %c0_i32_13 = arith.constant 0 : i32
    %36 = arith.cmpi ne, %35, %c0_i32_13 : i32
    scf.if %36 {
      %c8 = arith.constant 8 : index
      %43 = arith.index_cast %1 : i32 to index
      %44 = vector.load %arg13[%c8, %43] : memref<16x256xf32, #tpu.memory_space<vmem>>, vector<1x128xf32>
      tpu.vector_store %arg13[%c8, %43], %23 {strides = array<i32>} : memref<16x256xf32, #tpu.memory_space<vmem>>, vector<1x128xf32>,
      %c9 = arith.constant 9 : index
      %45 = arith.index_cast %1 : i32 to index
      %46 = vector.load %arg13[%c9, %45] : memref<16x256xf32, #tpu.memory_space<vmem>>, vector<1x128xf32>
      tpu.vector_store %arg13[%c9, %45], %27 {strides = array<i32>} : memref<16x256xf32, #tpu.memory_space<vmem>>, vector<1x128xf32>,
      %c10 = arith.constant 10 : index
      %47 = arith.index_cast %1 : i32 to index
      %48 = vector.load %arg13[%c10, %47] : memref<16x256xf32, #tpu.memory_space<vmem>>, vector<1x128xf32>
      tpu.vector_store %arg13[%c10, %47], %19 {strides = array<i32>} : memref<16x256xf32, #tpu.memory_space<vmem>>, vector<1x128xf32>,
      %c11 = arith.constant 11 : index
      %49 = arith.index_cast %1 : i32 to index
      %50 = vector.load %arg13[%c11, %49] : memref<16x256xf32, #tpu.memory_space<vmem>>, vector<1x128xf32>
      tpu.vector_store %arg13[%c11, %49], %21 {strides = array<i32>} : memref<16x256xf32, #tpu.memory_space<vmem>>, vector<1x128xf32>,
    } else {
    }
    %c3_i32 = arith.constant 3 : i32
    %37 = arith.cmpi eq, %arg2, %c3_i32 : i32
    %38 = arith.extui %37 : i1 to i32
    %c0_i32_14 = arith.constant 0 : i32
    %39 = arith.cmpi ne, %38, %c0_i32_14 : i32
    scf.if %39 {
      %c12 = arith.constant 12 : index
      %43 = arith.index_cast %1 : i32 to index
      %44 = vector.load %arg13[%c12, %43] : memref<16x256xf32, #tpu.memory_space<vmem>>, vector<1x128xf32>
      tpu.vector_store %arg13[%c12, %43], %23 {strides = array<i32>} : memref<16x256xf32, #tpu.memory_space<vmem>>, vector<1x128xf32>,
      %c13 = arith.constant 13 : index
      %45 = arith.index_cast %1 : i32 to index
      %46 = vector.load %arg13[%c13, %45] : memref<16x256xf32, #tpu.memory_space<vmem>>, vector<1x128xf32>
      tpu.vector_store %arg13[%c13, %45], %27 {strides = array<i32>} : memref<16x256xf32, #tpu.memory_space<vmem>>, vector<1x128xf32>,
      %c14 = arith.constant 14 : index
      %47 = arith.index_cast %1 : i32 to index
      %48 = vector.load %arg13[%c14, %47] : memref<16x256xf32, #tpu.memory_space<vmem>>, vector<1x128xf32>
      tpu.vector_store %arg13[%c14, %47], %19 {strides = array<i32>} : memref<16x256xf32, #tpu.memory_space<vmem>>, vector<1x128xf32>,
      %c15 = arith.constant 15 : index
      %49 = arith.index_cast %1 : i32 to index
      %50 = vector.load %arg13[%c15, %49] : memref<16x256xf32, #tpu.memory_space<vmem>>, vector<1x128xf32>
      tpu.vector_store %arg13[%c15, %49], %21 {strides = array<i32>} : memref<16x256xf32, #tpu.memory_space<vmem>>, vector<1x128xf32>,
    } else {
    }
    %c3_i32_15 = arith.constant 3 : i32
    %40 = arith.cmpi eq, %arg2, %c3_i32_15 : i32
    %41 = arith.extui %40 : i1 to i32
    %c0_i32_16 = arith.constant 0 : i32
    %42 = arith.cmpi ne, %41, %c0_i32_16 : i32
    scf.if %42 {
      %c0_17 = arith.constant 0 : index
      %43 = arith.index_cast %1 : i32 to index
      %44 = vector.load %arg13[%c0_17, %43] : memref<16x256xf32, #tpu.memory_space<vmem>>, vector<16x128xf32>
      %c0_18 = arith.constant 0 : index
      %c0_19 = arith.constant 0 : index
      %45 = vector.load %arg5[%c0_18, %c0_19] : memref<16x16xf32, #tpu.memory_space<vmem>>, vector<16x16xf32>
      %cst_20 = arith.constant dense<0.000000e+00> : vector<16x128xf32>
      %46 = tpu.matmul %45, %44, %cst_20 {dimension_numbers = #tpu.dot_dimension_numbers<[1], [0], [0], [1], [0, 0, 1, 1], [], []>} : vector<16x16xf32>, vector<16x128xf32>, vector<16x128xf32> -> vector<16x128xf32>
      %c0_21 = arith.constant 0 : index
      %c0_22 = arith.constant 0 : index
      %47 = vector.load %arg6[%c0_21, %c0_22] : memref<16x1xf32, #tpu.memory_space<vmem>>, vector<16x1xf32>
      %48 = vector.broadcast %47 : vector<16x1xf32> to vector<16x128xf32>
      %49 = arith.addf %46, %48 : vector<16x128xf32>
      %cst_23 = arith.constant 0.000000e+00 : f32
      %50 = vector.broadcast %cst_23 : f32 to vector<16x128xf32>
      %51 = arith.maximumf %49, %50 : vector<16x128xf32>
      %c0_24 = arith.constant 0 : index
      %c0_25 = arith.constant 0 : index
      %52 = vector.load %arg7[%c0_24, %c0_25] : memref<64x16xf32, #tpu.memory_space<vmem>>, vector<64x16xf32>
      %cst_26 = arith.constant dense<0.000000e+00> : vector<64x128xf32>
      %53 = tpu.matmul %52, %51, %cst_26 {dimension_numbers = #tpu.dot_dimension_numbers<[1], [0], [0], [1], [0, 0, 1, 1], [], []>} : vector<64x16xf32>, vector<16x128xf32>, vector<64x128xf32> -> vector<64x128xf32>
      %c0_27 = arith.constant 0 : index
      %c0_28 = arith.constant 0 : index
      %54 = vector.load %arg8[%c0_27, %c0_28] : memref<64x1xf32, #tpu.memory_space<vmem>>, vector<64x1xf32>
      %55 = vector.broadcast %54 : vector<64x1xf32> to vector<64x128xf32>
      %56 = arith.addf %53, %55 : vector<64x128xf32>
      %cst_29 = arith.constant 0.000000e+00 : f32
      %57 = vector.broadcast %cst_29 : f32 to vector<64x128xf32>
      %58 = arith.maximumf %56, %57 : vector<64x128xf32>
      %c0_30 = arith.constant 0 : index
      %c0_31 = arith.constant 0 : index
      %59 = vector.load %arg9[%c0_30, %c0_31] : memref<4x64xf32, #tpu.memory_space<vmem>>, vector<4x64xf32>
      %cst_32 = arith.constant dense<0.000000e+00> : vector<4x128xf32>
      %60 = tpu.matmul %59, %58, %cst_32 {dimension_numbers = #tpu.dot_dimension_numbers<[1], [0], [0], [1], [0, 0, 1, 1], [], []>} : vector<4x64xf32>, vector<64x128xf32>, vector<4x128xf32> -> vector<4x128xf32>
      %c0_33 = arith.constant 0 : index
      %c0_34 = arith.constant 0 : index
      %61 = vector.load %arg10[%c0_33, %c0_34] : memref<4x1xf32, #tpu.memory_space<vmem>>, vector<4x1xf32>
      %62 = vector.broadcast %61 : vector<4x1xf32> to vector<4x128xf32>
      %63 = arith.addf %60, %62 : vector<4x128xf32>
      %cst_35 = arith.constant dense<0xFF800000> : vector<128xf32>
      %64 = vector.multi_reduction <maximumf>, %63, %cst_35 [0] : vector<4x128xf32> to vector<128xf32>
      %65 = vector.shape_cast %64 : vector<128xf32> to vector<1x128xf32>
      %66 = vector.broadcast %65 : vector<1x128xf32> to vector<4x128xf32>
      %67 = arith.subf %63, %66 : vector<4x128xf32>
      %68 = math.exp %67 : vector<4x128xf32>
      %cst_36 = arith.constant dense<0.000000e+00> : vector<128xf32>
      %69 = vector.multi_reduction <add>, %68, %cst_36 [0] : vector<4x128xf32> to vector<128xf32>
      %70 = vector.shape_cast %69 : vector<128xf32> to vector<1x128xf32>
      %71 = tpu.reciprocal %70 {approx = true} : vector<1x128xf32> -> vector<1x128xf32>
      %72 = vector.broadcast %71 : vector<1x128xf32> to vector<4x128xf32>
      %73 = arith.mulf %68, %72 : vector<4x128xf32>
      %c0_37 = arith.constant 0 : index
      %c0_38 = arith.constant 0 : index
      %74 = arith.index_cast %1 : i32 to index
      %75 = vector.load %arg11[%c0_37, %c0_38, %74] : memref<1x4x256xf32, #tpu.memory_space<vmem>>, vector<1x4x128xf32>
      %76 = vector.shape_cast %75 : vector<1x4x128xf32> to vector<4x128xf32>
      %77 = vector.shape_cast %73 : vector<4x128xf32> to vector<1x4x128xf32>
      tpu.vector_store %arg11[%c0_37, %c0_38, %74], %77 {strides = array<i32>} : memref<1x4x256xf32, #tpu.memory_space<vmem>>, vector<1x4x128xf32>,
    } else {
    }
    return
  }
  func.func @transform_0(%arg0: i32, %arg1: i32, %arg2: i32, %arg3: i32) -> (i32, i32, i32, i32) {
    %c0_i32 = arith.constant 0 : i32
    %c0_i32_0 = arith.constant 0 : i32
    %c0_i32_1 = arith.constant 0 : i32
    return %arg1, %arg2, %c0_i32, %c0_i32_0 : i32, i32, i32, i32
  }
  func.func @transform_1(%arg0: i32, %arg1: i32, %arg2: i32, %arg3: i32) -> (i32, i32) {
    %c0_i32 = arith.constant 0 : i32
    %c0_i32_0 = arith.constant 0 : i32
    %c0_i32_1 = arith.constant 0 : i32
    return %c0_i32, %c0_i32_0 : i32, i32
  }
  func.func @transform_2(%arg0: i32, %arg1: i32, %arg2: i32, %arg3: i32) -> (i32, i32) {
    %c0_i32 = arith.constant 0 : i32
    %c0_i32_0 = arith.constant 0 : i32
    %c0_i32_1 = arith.constant 0 : i32
    return %c0_i32, %c0_i32_0 : i32, i32
  }
  func.func @transform_3(%arg0: i32, %arg1: i32, %arg2: i32, %arg3: i32) -> (i32, i32) {
    %c0_i32 = arith.constant 0 : i32
    %c0_i32_0 = arith.constant 0 : i32
    %c0_i32_1 = arith.constant 0 : i32
    return %c0_i32, %c0_i32_0 : i32, i32
  }
  func.func @transform_4(%arg0: i32, %arg1: i32, %arg2: i32, %arg3: i32) -> (i32, i32) {
    %c0_i32 = arith.constant 0 : i32
    %c0_i32_0 = arith.constant 0 : i32
    %c0_i32_1 = arith.constant 0 : i32
    return %c0_i32, %c0_i32_0 : i32, i32
  }
  func.func @transform_5(%arg0: i32, %arg1: i32, %arg2: i32, %arg3: i32) -> (i32, i32) {
    %c0_i32 = arith.constant 0 : i32
    %c0_i32_0 = arith.constant 0 : i32
    %c0_i32_1 = arith.constant 0 : i32
    return %c0_i32, %c0_i32_0 : i32, i32
  }
  func.func @transform_6(%arg0: i32, %arg1: i32, %arg2: i32, %arg3: i32) -> (i32, i32) {
    %c0_i32 = arith.constant 0 : i32
    %c0_i32_0 = arith.constant 0 : i32
    %c0_i32_1 = arith.constant 0 : i32
    return %c0_i32, %c0_i32_0 : i32, i32
  }
  func.func @transform_7(%arg0: i32, %arg1: i32, %arg2: i32, %arg3: i32) -> (i32, i32, i32) {
    %c0_i32 = arith.constant 0 : i32
    %c0_i32_0 = arith.constant 0 : i32
    return %arg1, %c0_i32, %arg0 : i32, i32, i32
  }
}

</mosaic_0001>

<llo_original>
// kernel: tpu_custom_call.1
$region0: #{tpu_custom_call.1}
  #allocation0 [shape = 'u32[]', space=smem, size = 0x4, offset = 0x4, fixed_abs, tag = 'smem constant byte address 0x4 - core index']
  #allocation1 [shape = 'u32[144,128]{1,0:T(1,128)}', space=vmem, size = 0x12000, scoped, tag = 'internal scratch']
  #allocation2 [shape = 'f32[32,256]{1,0:T(8,128)}', space=vmem, size = 0x8000, scoped, tag = 'scratch operand']
  #allocation3 [shape = 'f32[16,256]{1,0:T(8,128)}', space=vmem, size = 0x4000, scoped, tag = 'scratch operand']
  %s0 = inlined_call_operand.hbm [shape: f32[2,4,32,256], index: 0, kind: input, shape index: {}]
  %s1 = inlined_call_operand.vmem [shape: f32[16,16], index: 1, kind: input, shape index: {}]
  %s2 = inlined_call_operand.vmem [shape: f32[16,1], index: 2, kind: input, shape index: {}]
  %s3 = inlined_call_operand.vmem [shape: f32[64,16], index: 3, kind: input, shape index: {}]
  %s4 = inlined_call_operand.vmem [shape: f32[64,1], index: 4, kind: input, shape index: {}]
  %s5 = inlined_call_operand.vmem [shape: f32[4,64], index: 5, kind: input, shape index: {}]
  %s6 = inlined_call_operand.vmem [shape: f32[4,1], index: 6, kind: input, shape index: {}]
  %s7 = inlined_call_operand.hbm [shape: f32[2,4,256], index: 7, kind: output, shape index: {}]
  %s8 = sld [smem:[#allocation0]]
  $region85: #{tpu_custom_call.1} parent=0
    _
  %s10 = ssub.s32 1, %s8
  %s11 = scalar_select 0, %s10, %s8
  $region1: #{tpu_custom_call.1} parent=0
    #allocation4 [shape = 'u8[65536]{0}', space=vmem, size = 0x10000, scoped, tag = 'input window, operand 0']
    #allocation5 [shape = 's32[2]{0}', space=sflag, size = 0x8, scoped, tag = 'scoped memory for tpu_custom_call.1']
    #allocation6 [shape = 's32[2]{0}', space=sflag, size = 0x8, scoped, tag = 'scoped memory for tpu_custom_call.1']
    #allocation7 [shape = 'u8[8192]{0}', space=vmem, size = 0x2000, scoped, tag = 'output window, operand 0']
    %12 = vsyncpa [#allocation5], 0
    %s13 = scalar_lea.sflag [#allocation5], 1
    %14 = vsyncpa %s13, 0
    %15 = vsyncpa [#allocation6], 0
    %s16 = scalar_lea.sflag [#allocation6], 1
    %17 = vsyncpa %s16, 0
    loop: start=0, step=1, limit=18
    $region2: #{tpu_custom_call.1} parent=1 // loop_pre_header
      _
    $region3: #{tpu_custom_call.1} parent=1 // loop_header
      %s19 = sphi 0, %s23
      %p20 = scmp.ge.s32.totalorder %s19, 18
      %s26 = sphi 0, %s52
      %s27 = sphi 0, %s48
      %s28 = sphi 0, %s44
      %s29 = sphi 0, %s40
      %s30 = sphi 0, %s26
      %s31 = sphi 0, %s27
      %s32 = sphi 0, %s28
      %s33 = sphi 0, %s29
      %s34 = sphi 0, %s30
      %s35 = sphi 0, %s31
      %s36 = sphi 0, %s32
      %s37 = sphi 0, %s33
      %s57 = sphi 0, %s59
      %s60 = sphi 0, %s57
      %s61 = sphi 0, %s60
      %s77 = sphi 0, %s61
      %s81 = sphi 0, %s81
      %s83 = sphi 0, %s81
      %s84 = sphi 0, %s83
      %s98 = sphi 0, %s84
      %s102 = sphi 0, %s102
      %s104 = sphi 0, %s102
      %s105 = sphi 0, %s104
      %s119 = sphi 0, %s105
      %s123 = sphi 0, %s123
      %s125 = sphi 0, %s123
      %s126 = sphi 0, %s125
      %s140 = sphi 0, %s126
      %s144 = sphi 0, %s144
      %s146 = sphi 0, %s144
      %s147 = sphi 0, %s146
      %s161 = sphi 0, %s147
      %s165 = sphi 0, %s165
      %s167 = sphi 0, %s165
      %s168 = sphi 0, %s167
      %s182 = sphi 0, %s168
      %s186 = sphi 0, %s186
      %s188 = sphi 0, %s186
      %s189 = sphi 0, %s188
      %s203 = sphi 0, %s189
      %s211 = sphi 0, %s213
      %s214 = sphi 0, %s211
      %s215 = sphi 0, %s214
      %s231 = sphi 0, %s215
    $region4: #{tpu_custom_call.1} parent=1 // loop_header_branch
      %22 = sbr.rel (%p20) target = $region8
    $region5: #{tpu_custom_call.1} parent=1 // loop_body
      %s24 = ssub.s32 %s19, 1
      %s25 = ssub.s32 %s19, 2
      %s38 = sadd.s32 1, %s29
      %p39 = scmp.ge.s32.totalorder %s38, 2
      %s40 = scalar_select %p39, 0, %s38
      %s41 = sadd.s32 1, %s28
      %s42 = scalar_select %p39, %s41, %s28
      %p43 = scmp.ge.s32.totalorder %s42, 4
      %s44 = scalar_select %p43, 0, %s42
      %s45 = sadd.s32 1, %s27
      %s46 = scalar_select %p43, %s45, %s27
      %p47 = scmp.ge.s32.totalorder %s46, 2
      %s48 = scalar_select %p47, 0, %s46
      %s49 = sadd.s32 1, %s26
      %s50 = scalar_select %p47, %s49, %s26
      %p51 = scmp.ge.s32.totalorder %s50, 1
      %s52 = scalar_select %p51, 0, %s50
      %s53 = ssub.s32 %s27, %s48
      %s54 = ssub.s32 %s28, %s44
      %s55 = sor.u32 %s53, %s54
      %p56 = scmp.eq.s32.totalorder %s55, 0
      %s58 = sadd.s32 %s57, 1
      %s59 = scalar_select %p56, %s57, %s58
      %p62 = pneg %p56
      %p63 = scmp.eq.s32.totalorder %s19, 15
      %p64 = por %p62, %p63
      %p65 = scmp.ne.s32.totalorder %s57, %s60
      %p66 = scmp.eq.s32.totalorder %s19, 0
      %p67 = por %p65, %p66
      %p68 = scmp.ne.s32.totalorder %s57, %s60
      %p69 = scmp.eq.s32.totalorder %s24, 15
      %p70 = por %p68, %p69
      %p71 = scmp.ne.s32.totalorder %s60, %s61
      %p72 = scmp.eq.s32.totalorder %s24, 0
      %p73 = por %p71, %p72
      %p74 = scmp.ne.s32.totalorder %s60, %s61
      %p75 = scmp.eq.s32.totalorder %s25, 15
      %p76 = por %p74, %p75
      %p78 = scmp.ne.s32.totalorder %s61, %s77
      %p79 = scmp.eq.s32.totalorder %s25, 0
      %p80 = por %p78, %p79
      %s82 = sadd.s32 %s81, 1
      %p85 = scmp.eq.s32.totalorder %s19, 15
      %p86 = scmp.ne.s32.totalorder %s81, %s83
      %p87 = scmp.eq.s32.totalorder %s19, 0
      %p88 = por %p86, %p87
      %p89 = scmp.ne.s32.totalorder %s81, %s83
      %p90 = scmp.eq.s32.totalorder %s24, 15
      %p91 = por %p89, %p90
      %p92 = scmp.ne.s32.totalorder %s83, %s84
      %p93 = scmp.eq.s32.totalorder %s24, 0
      %p94 = por %p92, %p93
      %p95 = scmp.ne.s32.totalorder %s83, %s84
      %p96 = scmp.eq.s32.totalorder %s25, 15
      %p97 = por %p95, %p96
      %p99 = scmp.ne.s32.totalorder %s84, %s98
      %p100 = scmp.eq.s32.totalorder %s25, 0
      %p101 = por %p99, %p100
      %s103 = sadd.s32 %s102, 1
      %p106 = scmp.eq.s32.totalorder %s19, 15
      %p107 = scmp.ne.s32.totalorder %s102, %s104
      %p108 = scmp.eq.s32.totalorder %s19, 0
      %p109 = por %p107, %p108
      %p110 = scmp.ne.s32.totalorder %s102, %s104
      %p111 = scmp.eq.s32.totalorder %s24, 15
      %p112 = por %p110, %p111
      %p113 = scmp.ne.s32.totalorder %s104, %s105
      %p114 = scmp.eq.s32.totalorder %s24, 0
      %p115 = por %p113, %p114
      %p116 = scmp.ne.s32.totalorder %s104, %s105
      %p117 = scmp.eq.s32.totalorder %s25, 15
      %p118 = por %p116, %p117
      %p120 = scmp.ne.s32.totalorder %s105, %s119
      %p121 = scmp.eq.s32.totalorder %s25, 0
      %p122 = por %p120, %p121
      %s124 = sadd.s32 %s123, 1
      %p127 = scmp.eq.s32.totalorder %s19, 15
      %p128 = scmp.ne.s32.totalorder %s123, %s125
      %p129 = scmp.eq.s32.totalorder %s19, 0
      %p130 = por %p128, %p129
      %p131 = scmp.ne.s32.totalorder %s123, %s125
      %p132 = scmp.eq.s32.totalorder %s24, 15
      %p133 = por %p131, %p132
      %p134 = scmp.ne.s32.totalorder %s125, %s126
      %p135 = scmp.eq.s32.totalorder %s24, 0
      %p136 = por %p134, %p135
      %p137 = scmp.ne.s32.totalorder %s125, %s126
      %p138 = scmp.eq.s32.totalorder %s25, 15
      %p139 = por %p137, %p138
      %p141 = scmp.ne.s32.totalorder %s126, %s140
      %p142 = scmp.eq.s32.totalorder %s25, 0
      %p143 = por %p141, %p142
      %s145 = sadd.s32 %s144, 1
      %p148 = scmp.eq.s32.totalorder %s19, 15
      %p149 = scmp.ne.s32.totalorder %s144, %s146
      %p150 = scmp.eq.s32.totalorder %s19, 0
      %p151 = por %p149, %p150
      %p152 = scmp.ne.s32.totalorder %s144, %s146
      %p153 = scmp.eq.s32.totalorder %s24, 15
      %p154 = por %p152, %p153
      %p155 = scmp.ne.s32.totalorder %s146, %s147
      %p156 = scmp.eq.s32.totalorder %s24, 0
      %p157 = por %p155, %p156
      %p158 = scmp.ne.s32.totalorder %s146, %s147
      %p159 = scmp.eq.s32.totalorder %s25, 15
      %p160 = por %p158, %p159
      %p162 = scmp.ne.s32.totalorder %s147, %s161
      %p163 = scmp.eq.s32.totalorder %s25, 0
      %p164 = por %p162, %p163
      %s166 = sadd.s32 %s165, 1
      %p169 = scmp.eq.s32.totalorder %s19, 15
      %p170 = scmp.ne.s32.totalorder %s165, %s167
      %p171 = scmp.eq.s32.totalorder %s19, 0
      %p172 = por %p170, %p171
      %p173 = scmp.ne.s32.totalorder %s165, %s167
      %p174 = scmp.eq.s32.totalorder %s24, 15
      %p175 = por %p173, %p174
      %p176 = scmp.ne.s32.totalorder %s167, %s168
      %p177 = scmp.eq.s32.totalorder %s24, 0
      %p178 = por %p176, %p177
      %p179 = scmp.ne.s32.totalorder %s167, %s168
      %p180 = scmp.eq.s32.totalorder %s25, 15
      %p181 = por %p179, %p180
      %p183 = scmp.ne.s32.totalorder %s168, %s182
      %p184 = scmp.eq.s32.totalorder %s25, 0
      %p185 = por %p183, %p184
      %s187 = sadd.s32 %s186, 1
      %p190 = scmp.eq.s32.totalorder %s19, 15
      %p191 = scmp.ne.s32.totalorder %s186, %s188
      %p192 = scmp.eq.s32.totalorder %s19, 0
      %p193 = por %p191, %p192
      %p194 = scmp.ne.s32.totalorder %s186, %s188
      %p195 = scmp.eq.s32.totalorder %s24, 15
      %p196 = por %p194, %p195
      %p197 = scmp.ne.s32.totalorder %s188, %s189
      %p198 = scmp.eq.s32.totalorder %s24, 0
      %p199 = por %p197, %p198
      %p200 = scmp.ne.s32.totalorder %s188, %s189
      %p201 = scmp.eq.s32.totalorder %s25, 15
      %p202 = por %p200, %p201
      %p204 = scmp.ne.s32.totalorder %s189, %s203
      %p205 = scmp.eq.s32.totalorder %s25, 0
      %p206 = por %p204, %p205
      %s207 = ssub.s32 %s27, %s48
      %s208 = ssub.s32 %s26, %s52
      %s209 = sor.u32 %s207, %s208
      %p210 = scmp.eq.s32.totalorder %s209, 0
      %s212 = sadd.s32 %s211, 1
      %s213 = scalar_select %p210, %s211, %s212
      %p216 = pneg %p210
      %p217 = scmp.eq.s32.totalorder %s19, 15
      %p218 = por %p216, %p217
      %p219 = scmp.ne.s32.totalorder %s211, %s214
      %p220 = scmp.eq.s32.totalorder %s19, 0
      %p221 = por %p219, %p220
      %p222 = scmp.ne.s32.totalorder %s211, %s214
      %p223 = scmp.eq.s32.totalorder %s24, 15
      %p224 = por %p222, %p223
      %p225 = scmp.ne.s32.totalorder %s214, %s215
      %p226 = scmp.eq.s32.totalorder %s24, 0
      %p227 = por %p225, %p226
      %p228 = scmp.ne.s32.totalorder %s214, %s215
      %p229 = scmp.eq.s32.totalorder %s25, 15
      %p230 = por %p228, %p229
      %p232 = scmp.ne.s32.totalorder %s215, %s231
      %p233 = scmp.eq.s32.totalorder %s25, 0
      %p234 = por %p232, %p233
      %p235 = scmp.le.s32.totalorder 1, %s19
      %p236 = scmp.lt.s32.totalorder %s19, 17
      %p237 = pnand %p235, %p236
      %p238 = pneg %p237
      // Predicated region
      $region9: #{tpu_custom_call.1} parent=5 // pred_check
        _
      $region10: #{tpu_custom_call.1} parent=5 // pred_check_branch
        %240 = sbr.rel (%p237) target = $region12
      $region11: #{tpu_custom_call.1} parent=5 // pred_region
        %s241 = ssub.s32 %s19, 1
        // Predicated region
        $region13: #{tpu_custom_call.1} parent=11 // pred_check
          %p242 = pneg %p94
        $region14: #{tpu_custom_call.1} parent=11 // pred_check_branch
          %244 = sbr.rel (%p242) target = $region16
        $region15: #{tpu_custom_call.1} parent=11 // pred_region
          _
        $region16: #{tpu_custom_call.1} parent=11 // pred_fallthru
          _
        // Predicated region
        $region17: #{tpu_custom_call.1} parent=11 // pred_check
          %p245 = pneg %p115
        $region18: #{tpu_custom_call.1} parent=11 // pred_check_branch
          %247 = sbr.rel (%p245) target = $region20
        $region19: #{tpu_custom_call.1} parent=11 // pred_region
          _
        $region20: #{tpu_custom_call.1} parent=11 // pred_fallthru
          _
        // Predicated region
        $region21: #{tpu_custom_call.1} parent=11 // pred_check
          %p248 = pneg %p136
        $region22: #{tpu_custom_call.1} parent=11 // pred_check_branch
          %250 = sbr.rel (%p248) target = $region24
        $region23: #{tpu_custom_call.1} parent=11 // pred_region
          _
        $region24: #{tpu_custom_call.1} parent=11 // pred_fallthru
          _
        // Predicated region
        $region25: #{tpu_custom_call.1} parent=11 // pred_check
          %p251 = pneg %p157
        $region26: #{tpu_custom_call.1} parent=11 // pred_check_branch
          %253 = sbr.rel (%p251) target = $region28
        $region27: #{tpu_custom_call.1} parent=11 // pred_region
          _
        $region28: #{tpu_custom_call.1} parent=11 // pred_fallthru
          _
        // Predicated region
        $region29: #{tpu_custom_call.1} parent=11 // pred_check
          %p254 = pneg %p178
        $region30: #{tpu_custom_call.1} parent=11 // pred_check_branch
          %256 = sbr.rel (%p254) target = $region32
        $region31: #{tpu_custom_call.1} parent=11 // pred_region
          _
        $region32: #{tpu_custom_call.1} parent=11 // pred_fallthru
          _
        // Predicated region
        $region33: #{tpu_custom_call.1} parent=11 // pred_check
          %p257 = pneg %p199
        $region34: #{tpu_custom_call.1} parent=11 // pred_check_branch
          %259 = sbr.rel (%p257) target = $region36
        $region35: #{tpu_custom_call.1} parent=11 // pred_region
          _
        $region36: #{tpu_custom_call.1} parent=11 // pred_fallthru
          _
      $region12: #{tpu_custom_call.1} parent=5 // pred_fallthru
        _
      %p260 = scmp.lt.s32.totalorder %s19, 16
      // Predicated region
      $region37: #{tpu_custom_call.1} parent=5 // pred_check
        %p261 = pneg %p260
      $region38: #{tpu_custom_call.1} parent=5 // pred_check_branch
        %263 = sbr.rel (%p261) target = $region40
      $region39: #{tpu_custom_call.1} parent=5 // pred_region
        // Predicated region
        $region41: #{tpu_custom_call.1} parent=39 // pred_check
          %p264 = pneg %p67
        $region42: #{tpu_custom_call.1} parent=39 // pred_check_branch
          %266 = sbr.rel (%p264) target = $region44
        $region43: #{tpu_custom_call.1} parent=39 // pred_region
          %s267 = sand.u32 %s57, 1
          %s268 = scalar_lea.sflag [#allocation5], %s267
          %s269 = sand.u32 %s57, 1
          %s270 = smul.addr %s269, 64
          %s271 = scalar_lea.vmem [#allocation4], %s270
          %s273 = ssub.s32 1024, 1024
          %274 = vsyncadd %s268, %s273
          %s275 = smul.addr %s28, 8
          %s276 = smul.addr %s27, 32
          %s277 = sadd.s32 %s275, %s276
          %s278 = smul.addr %s277, 128
          %s279 = scalar_lea.hbm %s0, %s278
          %s280 = sshll.u32 %s271, 4
          %s281 = int_to_ptr.vmem [resolvable:$true] %s280
          %286 = dma.hbm_to_vmem [thread:$0]  %s279, 1024, %s281, %s268, 256, 256, 16
        $region44: #{tpu_custom_call.1} parent=39 // pred_fallthru
          _
      $region40: #{tpu_custom_call.1} parent=5 // pred_fallthru
        _
      %p287 = scmp.le.s32.totalorder 1, %s19
      %p288 = scmp.lt.s32.totalorder %s19, 17
      %p289 = pnand %p287, %p288
      %p290 = pneg %p289
      // Predicated region
      $region45: #{tpu_custom_call.1} parent=5 // pred_check
        _
      $region46: #{tpu_custom_call.1} parent=5 // pred_check_branch
        %292 = sbr.rel (%p289) target = $region48
      $region47: #{tpu_custom_call.1} parent=5 // pred_region
        %s293 = ssub.s32 %s19, 1
        %s294 = sand.u32 %s60, 1
        %s295 = scalar_lea.sflag [#allocation5], %s294
        %s296 = sand.u32 %s60, 1
        %s297 = smul.addr %s296, 64
        %s298 = scalar_lea.vmem [#allocation4], %s297
        // Predicated region
        $region49: #{tpu_custom_call.1} parent=47 // pred_check
          %p299 = pneg %p73
        $region50: #{tpu_custom_call.1} parent=47 // pred_check_branch
          %301 = sbr.rel (%p299) target = $region52
        $region51: #{tpu_custom_call.1} parent=47 // pred_region
          %302 = dma.done %s295, 1024
        $region52: #{tpu_custom_call.1} parent=47 // pred_fallthru
          _
        %s303 = sand.u32 %s60, 1
        %s304 = scalar_lea.sflag [#allocation5], %s303
        %s305 = sand.u32 %s60, 1
        %s306 = smul.addr %s305, 64
        %s307 = scalar_lea.vmem [#allocation4], %s306
        %p308 = pneg %p73
        %p309 = pneg %p70
        %p310 = pneg %p94
        %p311 = pneg %p91
        %p312 = pneg %p115
        %p313 = pneg %p112
        %p314 = pneg %p136
        %p315 = pneg %p133
        %p316 = pneg %p157
        %p317 = pneg %p154
        %p318 = pneg %p178
        %p319 = pneg %p175
        %p320 = pneg %p199
        %p321 = pneg %p196
        %p322 = pneg %p227
        %p323 = pneg %p224
        %s324 = sand.u32 %s214, 1
        %s325 = scalar_lea.sflag [#allocation6], %s324
        %s326 = sand.u32 %s214, 1
        %s327 = smul.addr %s326, 8
        %s328 = scalar_lea.vmem [#allocation7], %s327
        %s329 = smul.u32 2, %s30
        %s330 = smul.u32 %s33, 128
        %s331 = smul.u32 %s30, 256
        %s332 = sadd.s32 %s331, %s330
        %p333 = scmp.eq.s32.totalorder %s33, 0
        // Predicated region
        $region53: #{tpu_custom_call.1} parent=47 // pred_check
          %p334 = pneg %p333
        $region54: #{tpu_custom_call.1} parent=47 // pred_check_branch
          %336 = sbr.rel (%p334) target = $region56
        $region55: #{tpu_custom_call.1} parent=47 // pred_region
          %v337 = vld [vmem:[%s298] sm:$0xff]
          %v338 = vld [vmem:[%s298 + $0x8] sm:$0xff]
          %v339 = vld [vmem:[%s298 + $0x10] sm:$0xff]
          %v340 = vld [vmem:[%s298 + $0x18] sm:$0xff]
          %v341 = vld [vmem:[%s298 + $0x20] sm:$0xff]
          %v342 = vld [vmem:[%s298 + $0x28] sm:$0xff]
          %v343 = vld [vmem:[%s298 + $0x30] sm:$0xff]
          %v344 = vld [vmem:[%s298 + $0x38] sm:$0xff]
          %v345 = vmul.f32 %v337, %v337
          %v346 = vmul.f32 %v338, %v338
          %v347 = vmul.f32 %v339, %v339
          %v348 = vmul.f32 %v340, %v340
          %v349 = vmul.f32 %v341, %v341
          %v350 = vmul.f32 %v342, %v342
          %v351 = vmul.f32 %v343, %v343
          %v352 = vmul.f32 %v344, %v344
          %v353 = vadd.f32 %v345, %v347
          %v354 = vadd.f32 %v353, %v349
          %v355 = vadd.f32 %v354, %v351
          %v356 = vrot.slane %v355, 4
          %v357 = vadd.f32 %v355, %v356
          %v358 = vrot.slane %v357, 2
          %v359 = vadd.f32 %v357, %v358
          %v360 = vrot.slane %v359, 1
          %v361 = vadd.f32 %v359, %v360
          %v362 = vadd.f32 %v346, %v348
          %v363 = vadd.f32 %v362, %v350
          %v364 = vadd.f32 %v363, %v352
          %v365 = vrot.slane %v364, 4
          %v366 = vadd.f32 %v364, %v365
          %v367 = vrot.slane %v366, 2
          %v368 = vadd.f32 %v366, %v367
          %v369 = vrot.slane %v368, 1
          %v370 = vadd.f32 %v368, %v369
          %v371 = vmax.f32 %v361, 1e-24
          %v372 = vmax.f32 %v370, 1e-24
          %v373 = vrsqrt.pop %v371
          %v374 = vrsqrt.pop %v372
          %v375 = vmul.f32 %v337, %v373
          %v376 = vmul.f32 %v338, %v374
          %v377 = vmul.f32 %v339, %v373
          %v378 = vmul.f32 %v340, %v374
          %v379 = vmul.f32 %v341, %v373
          %v380 = vmul.f32 %v342, %v374
          %v381 = vmul.f32 %v343, %v373
          %v382 = vmul.f32 %v344, %v374
          %383 = vst [vmem:[#allocation2] sm:$0xff] %v375
          %384 = vst [vmem:[#allocation2 + $0x8] sm:$0xff] %v376
          %385 = vst [vmem:[#allocation2 + $0x10] sm:$0xff] %v377
          %386 = vst [vmem:[#allocation2 + $0x18] sm:$0xff] %v378
          %387 = vst [vmem:[#allocation2 + $0x20] sm:$0xff] %v379
          %388 = vst [vmem:[#allocation2 + $0x28] sm:$0xff] %v380
          %389 = vst [vmem:[#allocation2 + $0x30] sm:$0xff] %v381
          %390 = vst [vmem:[#allocation2 + $0x38] sm:$0xff] %v382
        $region56: #{tpu_custom_call.1} parent=47 // pred_fallthru
          _
        %s391 = sshra.s32 %s332, 7
        %s392 = sand.u32 %s332, 127
        %s393 = smul.addr %s391, 8
        %s394 = scalar_lea.vmem [#allocation2], %s393
        %v395 = vld [vmem:[%s394] sm:$0xff]
        %v396 = vld [vmem:[%s394 + $0x10] sm:$0xff]
        %v397 = vld [vmem:[%s394 + $0x20] sm:$0xff]
        %v398 = vld [vmem:[%s394 + $0x30] sm:$0xff]
        %v399 = vld [vmem:[#allocation2] sm:$0xff]
        %v400 = vld [vmem:[#allocation2 + $0x8] sm:$0xff]
        %v401 = vld [vmem:[#allocation2 + $0x10] sm:$0xff]
        %v402 = vld [vmem:[#allocation2 + $0x18] sm:$0xff]
        %v403 = vld [vmem:[#allocation2 + $0x20] sm:$0xff]
        %v404 = vld [vmem:[#allocation2 + $0x28] sm:$0xff]
        %v405 = vld [vmem:[#allocation2 + $0x30] sm:$0xff]
        %v406 = vld [vmem:[#allocation2 + $0x38] sm:$0xff]
        %407 = vxpose.xlu0.b32.start [1/16] %v399, 128
        %408 = vxpose.xlu0.b32.cont [2/16] %v401, 128
        %409 = vxpose.xlu0.b32.cont [3/16] %v403, 128
        %410 = vxpose.xlu0.b32.cont [4/16] %v405, 128
        %411 = vxpose.xlu0.b32.cont [5/16] 0.0, 128
        %412 = vxpose.xlu0.b32.cont [6/16] 0.0, 128
        %413 = vxpose.xlu0.b32.cont [7/16] 0.0, 128
        %414 = vxpose.xlu0.b32.cont [8/16] 0.0, 128
        %415 = vxpose.xlu0.b32.cont [9/16] 0.0, 128
        %416 = vxpose.xlu0.b32.cont [10/16] 0.0, 128
        %417 = vxpose.xlu0.b32.cont [11/16] 0.0, 128
        %418 = vxpose.xlu0.b32.cont [12/16] 0.0, 128
        %419 = vxpose.xlu0.b32.cont [13/16] 0.0, 128
        %420 = vxpose.xlu0.b32.cont [14/16] 0.0, 128
        %421 = vxpose.xlu0.b32.cont [15/16] 0.0, 128
        %422 = vxpose.xlu0.b32.end [16/16] 0.0, 128
        %v423 = vpop.trf.xlu0
        %v424 = vpop.trf.xlu0
        %v425 = vpop.trf.xlu0
        %v426 = vpop.trf.xlu0
        %v427 = vpop.trf.xlu0
        %v428 = vpop.trf.xlu0
        %v429 = vpop.trf.xlu0
        %v430 = vpop.trf.xlu0
        %v431 = vpop.trf.xlu0
        %v432 = vpop.trf.xlu0
        %v433 = vpop.trf.xlu0
        %v434 = vpop.trf.xlu0
        %v435 = vpop.trf.xlu0
        %v436 = vpop.trf.xlu0
        %v437 = vpop.trf.xlu0
        %v438 = vpop.trf.xlu0
        %439 = vxpose.xlu0.b32.start [1/16] %v400, 128
        %440 = vxpose.xlu0.b32.cont [2/16] %v402, 128
        %441 = vxpose.xlu0.b32.cont [3/16] %v404, 128
        %442 = vxpose.xlu0.b32.cont [4/16] %v406, 128
        %443 = vxpose.xlu0.b32.cont [5/16] 0.0, 128
        %444 = vxpose.xlu0.b32.cont [6/16] 0.0, 128
        %445 = vxpose.xlu0.b32.cont [7/16] 0.0, 128
        %446 = vxpose.xlu0.b32.cont [8/16] 0.0, 128
        %447 = vxpose.xlu0.b32.cont [9/16] 0.0, 128
        %448 = vxpose.xlu0.b32.cont [10/16] 0.0, 128
        %449 = vxpose.xlu0.b32.cont [11/16] 0.0, 128
        %450 = vxpose.xlu0.b32.cont [12/16] 0.0, 128
        %451 = vxpose.xlu0.b32.cont [13/16] 0.0, 128
        %452 = vxpose.xlu0.b32.cont [14/16] 0.0, 128
        %453 = vxpose.xlu0.b32.cont [15/16] 0.0, 128
        %454 = vxpose.xlu0.b32.end [16/16] 0.0, 128
        %v455 = vpop.trf.xlu0
        %v456 = vpop.trf.xlu0
        %v457 = vpop.trf.xlu0
        %v458 = vpop.trf.xlu0
        %v459 = vpop.trf.xlu0
        %v460 = vpop.trf.xlu0
        %v461 = vpop.trf.xlu0
        %v462 = vpop.trf.xlu0
        %v463 = vpop.trf.xlu0
        %v464 = vpop.trf.xlu0
        %v465 = vpop.trf.xlu0
        %v466 = vpop.trf.xlu0
        %v467 = vpop.trf.xlu0
        %v468 = vpop.trf.xlu0
        %v469 = vpop.trf.xlu0
        %v470 = vpop.trf.xlu0
        %vm471 = vcmask 261120
        %v473 = vsel %vm471, %v423, 0
        %v476 = vsel %vm471, %v424, 0
        %v479 = vsel %vm471, %v425, 0
        %v482 = vsel %vm471, %v426, 0
        %v485 = vsel %vm471, %v427, 0
        %v488 = vsel %vm471, %v428, 0
        %v491 = vsel %vm471, %v429, 0
        %v494 = vsel %vm471, %v430, 0
        %v497 = vsel %vm471, %v431, 0
        %v500 = vsel %vm471, %v432, 0
        %v503 = vsel %vm471, %v433, 0
        %v506 = vsel %vm471, %v434, 0
        %v509 = vsel %vm471, %v435, 0
        %v512 = vsel %vm471, %v436, 0
        %v515 = vsel %vm471, %v437, 0
        %v518 = vsel %vm471, %v438, 0
        %v521 = vsel %vm471, %v455, 0
        %v524 = vsel %vm471, %v456, 0
        %v527 = vsel %vm471, %v457, 0
        %v530 = vsel %vm471, %v458, 0
        %v533 = vsel %vm471, %v459, 0
        %v536 = vsel %vm471, %v460, 0
        %v539 = vsel %vm471, %v461, 0
        %v542 = vsel %vm471, %v462, 0
        %v545 = vsel %vm471, %v463, 0
        %v548 = vsel %vm471, %v464, 0
        %v551 = vsel %vm471, %v465, 0
        %v554 = vsel %vm471, %v466, 0
        %v557 = vsel %vm471, %v467, 0
        %v560 = vsel %vm471, %v468, 0
        %v563 = vsel %vm471, %v469, 0
        %v566 = vsel %vm471, %v470, 0
        %568 = vmatprep.subr.mxu0 0.0
        %569 = vmatpush1.msra.mxu0 %v395
        %570 = vmatprep.subr.mxu0 0.0
        %571 = vmatpush1.msra.mxu0 %v396
        %572 = vmatprep.subr.mxu0 0.0
        %573 = vmatpush1.msra.mxu0 %v397
        %574 = vmatprep.subr.mxu0 0.0
        %575 = vmatpush1.msra.mxu0 %v398
        %576 = vmatprep.subr.mxu0 0.0
        %577 = vmatpush1.msra.mxu0 0.0
        %578 = vmatprep.subr.mxu0 0.0
        %579 = vmatpush1.msra.mxu0 0.0
        %580 = vmatprep.subr.mxu0 0.0
        %581 = vmatpush1.msra.mxu0 0.0
        %582 = vmatprep.subr.mxu0 0.0
        %583 = vmatpush1.msra.mxu0 0.0
        %584 = vmatprep.subr.mxu0 0.0
        %585 = vmatpush1.msra.mxu0 0.0
        %586 = vmatprep.subr.mxu0 0.0
        %587 = vmatpush1.msra.mxu0 0.0
        %588 = vmatprep.subr.mxu0 0.0
        %589 = vmatpush1.msra.mxu0 0.0
        %590 = vmatprep.subr.mxu0 0.0
        %591 = vmatpush1.msra.mxu0 0.0
        %592 = vmatprep.subr.mxu0 0.0
        %593 = vmatpush1.msra.mxu0 0.0
        %594 = vmatprep.subr.mxu0 0.0
        %595 = vmatpush1.msra.mxu0 0.0
        %596 = vmatprep.subr.mxu0 0.0
        %597 = vmatpush1.msra.mxu0 0.0
        %598 = vmatprep.subr.mxu0 0.0
        %599 = vmatpush1.msra.mxu0 0.0
        %600 = vmatprep.subr.mxu0 0.0
        %601 = vmatpush1.msra.mxu0 0.0
        %602 = vmatprep.subr.mxu0 0.0
        %603 = vmatpush1.msra.mxu0 0.0
        %604 = vmatprep.subr.mxu0 0.0
        %605 = vmatpush1.msra.mxu0 0.0
        %606 = vmatprep.subr.mxu0 0.0
        %607 = vmatpush1.msra.mxu0 0.0
        %608 = vmatprep.subr.mxu0 0.0
        %609 = vmatpush1.msra.mxu0 0.0
        %610 = vmatprep.subr.mxu0 0.0
        %611 = vmatpush1.msra.mxu0 0.0
        %612 = vmatprep.subr.mxu0 0.0
        %613 = vmatpush1.msra.mxu0 0.0
        %614 = vmatprep.subr.mxu0 0.0
        %615 = vmatpush1.msra.mxu0 0.0
        %616 = vmatprep.subr.mxu0 0.0
        %617 = vmatpush1.msra.mxu0 0.0
        %618 = vmatprep.subr.mxu0 0.0
        %619 = vmatpush1.msra.mxu0 0.0
        %620 = vmatprep.subr.mxu0 0.0
        %621 = vmatpush1.msra.mxu0 0.0
        %622 = vmatprep.subr.mxu0 0.0
        %623 = vmatpush1.msra.mxu0 0.0
        %624 = vmatprep.subr.mxu0 0.0
        %625 = vmatpush1.msra.mxu0 0.0
        %626 = vmatprep.subr.mxu0 0.0
        %627 = vmatpush1.msra.mxu0 0.0
        %628 = vmatprep.subr.mxu0 0.0
        %629 = vmatpush1.msra.mxu0 0.0
        %630 = vmatprep.subr.mxu0 0.0
        %631 = vmatpush1.msra.mxu0 0.0
        %632 = vmatprep.mubr.f32.mxu0 0.0
        %633 = vmatmul.mubr.f32.gmra.mrb[0].mxu0 %v473
        %v634 = vpop.f32.mrb[0].mxu0
        %v635 = vadd.f32 0.0, %v634
        %v636 = vpop.f32.mrb[0].mxu0
        %637 = vmatprep.mubr.f32.mxu0 0.0
        %638 = vmatmul.mubr.f32.gmra.mrb[0].mxu0 %v476
        %v639 = vpop.f32.mrb[0].mxu0
        %v640 = vadd.f32 0.0, %v639
        %v641 = vpop.f32.mrb[0].mxu0
        %642 = vmatprep.mubr.f32.mxu0 0.0
        %643 = vmatmul.mubr.f32.gmra.mrb[0].mxu0 %v479
        %v644 = vpop.f32.mrb[0].mxu0
        %v645 = vadd.f32 0.0, %v644
        %v646 = vpop.f32.mrb[0].mxu0
        %647 = vmatprep.mubr.f32.mxu0 0.0
        %648 = vmatmul.mubr.f32.gmra.mrb[0].mxu0 %v482
        %v649 = vpop.f32.mrb[0].mxu0
        %v650 = vadd.f32 0.0, %v649
        %v651 = vpop.f32.mrb[0].mxu0
        %652 = vmatprep.mubr.f32.mxu0 0.0
        %653 = vmatmul.mubr.f32.gmra.mrb[0].mxu0 %v485
        %v654 = vpop.f32.mrb[0].mxu0
        %v655 = vadd.f32 0.0, %v654
        %v656 = vpop.f32.mrb[0].mxu0
        %657 = vmatprep.mubr.f32.mxu0 0.0
        %658 = vmatmul.mubr.f32.gmra.mrb[0].mxu0 %v488
        %v659 = vpop.f32.mrb[0].mxu0
        %v660 = vadd.f32 0.0, %v659
        %v661 = vpop.f32.mrb[0].mxu0
        %662 = vmatprep.mubr.f32.mxu0 0.0
        %663 = vmatmul.mubr.f32.gmra.mrb[0].mxu0 %v491
        %v664 = vpop.f32.mrb[0].mxu0
        %v665 = vadd.f32 0.0, %v664
        %v666 = vpop.f32.mrb[0].mxu0
        %667 = vmatprep.mubr.f32.mxu0 0.0
        %668 = vmatmul.mubr.f32.gmra.mrb[0].mxu0 %v494
        %v669 = vpop.f32.mrb[0].mxu0
        %v670 = vadd.f32 0.0, %v669
        %v671 = vpop.f32.mrb[0].mxu0
        %672 = vmatprep.mubr.f32.mxu0 0.0
        %673 = vmatmul.mubr.f32.gmra.mrb[0].mxu0 %v497
        %v674 = vpop.f32.mrb[0].mxu0
        %v675 = vadd.f32 0.0, %v674
        %v676 = vpop.f32.mrb[0].mxu0
        %677 = vmatprep.mubr.f32.mxu0 0.0
        %678 = vmatmul.mubr.f32.gmra.mrb[0].mxu0 %v500
        %v679 = vpop.f32.mrb[0].mxu0
        %v680 = vadd.f32 0.0, %v679
        %v681 = vpop.f32.mrb[0].mxu0
        %682 = vmatprep.mubr.f32.mxu0 0.0
        %683 = vmatmul.mubr.f32.gmra.mrb[0].mxu0 %v503
        %v684 = vpop.f32.mrb[0].mxu0
        %v685 = vadd.f32 0.0, %v684
        %v686 = vpop.f32.mrb[0].mxu0
        %687 = vmatprep.mubr.f32.mxu0 0.0
        %688 = vmatmul.mubr.f32.gmra.mrb[0].mxu0 %v506
        %v689 = vpop.f32.mrb[0].mxu0
        %v690 = vadd.f32 0.0, %v689
        %v691 = vpop.f32.mrb[0].mxu0
        %692 = vmatprep.mubr.f32.mxu0 0.0
        %693 = vmatmul.mubr.f32.gmra.mrb[0].mxu0 %v509
        %v694 = vpop.f32.mrb[0].mxu0
        %v695 = vadd.f32 0.0, %v694
        %v696 = vpop.f32.mrb[0].mxu0
        %697 = vmatprep.mubr.f32.mxu0 0.0
        %698 = vmatmul.mubr.f32.gmra.mrb[0].mxu0 %v512
        %v699 = vpop.f32.mrb[0].mxu0
        %v700 = vadd.f32 0.0, %v699
        %v701 = vpop.f32.mrb[0].mxu0
        %702 = vmatprep.mubr.f32.mxu0 0.0
        %703 = vmatmul.mubr.f32.gmra.mrb[0].mxu0 %v515
        %v704 = vpop.f32.mrb[0].mxu0
        %v705 = vadd.f32 0.0, %v704
        %v706 = vpop.f32.mrb[0].mxu0
        %707 = vmatprep.mubr.f32.mxu0 0.0
        %708 = vmatmul.mubr.f32.gmra.mrb[0].mxu0 %v518
        %v709 = vpop.f32.mrb[0].mxu0
        %v710 = vadd.f32 0.0, %v709
        %v711 = vpop.f32.mrb[0].mxu0
        %712 = vmatprep.mubr.f32.mxu0 0.0
        %713 = vmatmul.mubr.f32.gmra.mrb[0].mxu0 %v521
        %v714 = vpop.f32.mrb[0].mxu0
        %v715 = vadd.f32 0.0, %v714
        %v716 = vpop.f32.mrb[0].mxu0
        %717 = vmatprep.mubr.f32.mxu0 0.0
        %718 = vmatmul.mubr.f32.gmra.mrb[0].mxu0 %v524
        %v719 = vpop.f32.mrb[0].mxu0
        %v720 = vadd.f32 0.0, %v719
        %v721 = vpop.f32.mrb[0].mxu0
        %722 = vmatprep.mubr.f32.mxu0 0.0
        %723 = vmatmul.mubr.f32.gmra.mrb[0].mxu0 %v527
        %v724 = vpop.f32.mrb[0].mxu0
        %v725 = vadd.f32 0.0, %v724
        %v726 = vpop.f32.mrb[0].mxu0
        %727 = vmatprep.mubr.f32.mxu0 0.0
        %728 = vmatmul.mubr.f32.gmra.mrb[0].mxu0 %v530
        %v729 = vpop.f32.mrb[0].mxu0
        %v730 = vadd.f32 0.0, %v729
        %v731 = vpop.f32.mrb[0].mxu0
        %732 = vmatprep.mubr.f32.mxu0 0.0
        %733 = vmatmul.mubr.f32.gmra.mrb[0].mxu0 %v533
        %v734 = vpop.f32.mrb[0].mxu0
        %v735 = vadd.f32 0.0, %v734
        %v736 = vpop.f32.mrb[0].mxu0
        %737 = vmatprep.mubr.f32.mxu0 0.0
        %738 = vmatmul.mubr.f32.gmra.mrb[0].mxu0 %v536
        %v739 = vpop.f32.mrb[0].mxu0
        %v740 = vadd.f32 0.0, %v739
        %v741 = vpop.f32.mrb[0].mxu0
        %742 = vmatprep.mubr.f32.mxu0 0.0
        %743 = vmatmul.mubr.f32.gmra.mrb[0].mxu0 %v539
        %v744 = vpop.f32.mrb[0].mxu0
        %v745 = vadd.f32 0.0, %v744
        %v746 = vpop.f32.mrb[0].mxu0
        %747 = vmatprep.mubr.f32.mxu0 0.0
        %748 = vmatmul.mubr.f32.gmra.mrb[0].mxu0 %v542
        %v749 = vpop.f32.mrb[0].mxu0
        %v750 = vadd.f32 0.0, %v749
        %v751 = vpop.f32.mrb[0].mxu0
        %752 = vmatprep.mubr.f32.mxu0 0.0
        %753 = vmatmul.mubr.f32.gmra.mrb[0].mxu0 %v545
        %v754 = vpop.f32.mrb[0].mxu0
        %v755 = vadd.f32 0.0, %v754
        %v756 = vpop.f32.mrb[0].mxu0
        %757 = vmatprep.mubr.f32.mxu0 0.0
        %758 = vmatmul.mubr.f32.gmra.mrb[0].mxu0 %v548
        %v759 = vpop.f32.mrb[0].mxu0
        %v760 = vadd.f32 0.0, %v759
        %v761 = vpop.f32.mrb[0].mxu0
        %762 = vmatprep.mubr.f32.mxu0 0.0
        %763 = vmatmul.mubr.f32.gmra.mrb[0].mxu0 %v551
        %v764 = vpop.f32.mrb[0].mxu0
        %v765 = vadd.f32 0.0, %v764
        %v766 = vpop.f32.mrb[0].mxu0
        %767 = vmatprep.mubr.f32.mxu0 0.0
        %768 = vmatmul.mubr.f32.gmra.mrb[0].mxu0 %v554
        %v769 = vpop.f32.mrb[0].mxu0
        %v770 = vadd.f32 0.0, %v769
        %v771 = vpop.f32.mrb[0].mxu0
        %772 = vmatprep.mubr.f32.mxu0 0.0
        %773 = vmatmul.mubr.f32.gmra.mrb[0].mxu0 %v557
        %v774 = vpop.f32.mrb[0].mxu0
        %v775 = vadd.f32 0.0, %v774
        %v776 = vpop.f32.mrb[0].mxu0
        %777 = vmatprep.mubr.f32.mxu0 0.0
        %778 = vmatmul.mubr.f32.gmra.mrb[0].mxu0 %v560
        %v779 = vpop.f32.mrb[0].mxu0
        %v780 = vadd.f32 0.0, %v779
        %v781 = vpop.f32.mrb[0].mxu0
        %782 = vmatprep.mubr.f32.mxu0 0.0
        %783 = vmatmul.mubr.f32.gmra.mrb[0].mxu0 %v563
        %v784 = vpop.f32.mrb[0].mxu0
        %v785 = vadd.f32 0.0, %v784
        %v786 = vpop.f32.mrb[0].mxu0
        %787 = vmatprep.mubr.f32.mxu0 0.0
        %788 = vmatmul.mubr.f32.gmra.mrb[0].mxu0 %v566
        %v789 = vpop.f32.mrb[0].mxu0
        %v790 = vadd.f32 0.0, %v789
        %v791 = vpop.f32.mrb[0].mxu0
        %792 = vdwg.mxu0
        %v793 = vadd.f32 %v635, %v640
        %v794 = vadd.f32 %v793, %v645
        %v795 = vadd.f32 %v794, %v650
        %v796 = vadd.f32 %v795, %v655
        %v797 = vadd.f32 %v796, %v660
        %v798 = vadd.f32 %v797, %v665
        %v799 = vadd.f32 %v798, %v670
        %v800 = vadd.f32 %v799, %v675
        %v801 = vadd.f32 %v800, %v680
        %v802 = vadd.f32 %v801, %v685
        %v803 = vadd.f32 %v802, %v690
        %v804 = vadd.f32 %v803, %v695
        %v805 = vadd.f32 %v804, %v700
        %v806 = vadd.f32 %v805, %v705
        %v807 = vadd.f32 %v806, %v710
        %v808 = vadd.f32 %v807, %v715
        %v809 = vadd.f32 %v808, %v720
        %v810 = vadd.f32 %v809, %v725
        %v811 = vadd.f32 %v810, %v730
        %v812 = vadd.f32 %v811, %v735
        %v813 = vadd.f32 %v812, %v740
        %v814 = vadd.f32 %v813, %v745
        %v815 = vadd.f32 %v814, %v750
        %v816 = vadd.f32 %v815, %v755
        %v817 = vadd.f32 %v816, %v760
        %v818 = vadd.f32 %v817, %v765
        %v819 = vadd.f32 %v818, %v770
        %v820 = vadd.f32 %v819, %v775
        %v821 = vadd.f32 %v820, %v780
        %v822 = vadd.f32 %v821, %v785
        %v823 = vadd.f32 %v822, %v790
        %v824 = vrot.slane %v823, 4
        %v825 = vadd.f32 %v823, %v824
        %v826 = vrot.slane %v825, 2
        %v827 = vadd.f32 %v825, %v826
        %v828 = vrot.slane %v827, 1
        %v829 = vadd.f32 %v827, %v828
        %v830 = vmul.f32 %v635, %v635
        %v831 = vmul.f32 %v640, %v640
        %v832 = vmul.f32 %v645, %v645
        %v833 = vmul.f32 %v650, %v650
        %v834 = vmul.f32 %v655, %v655
        %v835 = vmul.f32 %v660, %v660
        %v836 = vmul.f32 %v665, %v665
        %v837 = vmul.f32 %v670, %v670
        %v838 = vmul.f32 %v675, %v675
        %v839 = vmul.f32 %v680, %v680
        %v840 = vmul.f32 %v685, %v685
        %v841 = vmul.f32 %v690, %v690
        %v842 = vmul.f32 %v695, %v695
        %v843 = vmul.f32 %v700, %v700
        %v844 = vmul.f32 %v705, %v705
        %v845 = vmul.f32 %v710, %v710
        %v846 = vmul.f32 %v715, %v715
        %v847 = vmul.f32 %v720, %v720
        %v848 = vmul.f32 %v725, %v725
        %v849 = vmul.f32 %v730, %v730
        %v850 = vmul.f32 %v735, %v735
        %v851 = vmul.f32 %v740, %v740
        %v852 = vmul.f32 %v745, %v745
        %v853 = vmul.f32 %v750, %v750
        %v854 = vmul.f32 %v755, %v755
        %v855 = vmul.f32 %v760, %v760
        %v856 = vmul.f32 %v765, %v765
        %v857 = vmul.f32 %v770, %v770
        %v858 = vmul.f32 %v775, %v775
        %v859 = vmul.f32 %v780, %v780
        %v860 = vmul.f32 %v785, %v785
        %v861 = vmul.f32 %v790, %v790
        %v862 = vadd.f32 %v830, %v831
        %v863 = vadd.f32 %v862, %v832
        %v864 = vadd.f32 %v863, %v833
        %v865 = vadd.f32 %v864, %v834
        %v866 = vadd.f32 %v865, %v835
        %v867 = vadd.f32 %v866, %v836
        %v868 = vadd.f32 %v867, %v837
        %v869 = vadd.f32 %v868, %v838
        %v870 = vadd.f32 %v869, %v839
        %v871 = vadd.f32 %v870, %v840
        %v872 = vadd.f32 %v871, %v841
        %v873 = vadd.f32 %v872, %v842
        %v874 = vadd.f32 %v873, %v843
        %v875 = vadd.f32 %v874, %v844
        %v876 = vadd.f32 %v875, %v845
        %v877 = vadd.f32 %v876, %v846
        %v878 = vadd.f32 %v877, %v847
        %v879 = vadd.f32 %v878, %v848
        %v880 = vadd.f32 %v879, %v849
        %v881 = vadd.f32 %v880, %v850
        %v882 = vadd.f32 %v881, %v851
        %v883 = vadd.f32 %v882, %v852
        %v884 = vadd.f32 %v883, %v853
        %v885 = vadd.f32 %v884, %v854
        %v886 = vadd.f32 %v885, %v855
        %v887 = vadd.f32 %v886, %v856
        %v888 = vadd.f32 %v887, %v857
        %v889 = vadd.f32 %v888, %v858
        %v890 = vadd.f32 %v889, %v859
        %v891 = vadd.f32 %v890, %v860
        %v892 = vadd.f32 %v891, %v861
        %v893 = vrot.slane %v892, 4
        %v894 = vadd.f32 %v892, %v893
        %v895 = vrot.slane %v894, 2
        %v896 = vadd.f32 %v894, %v895
        %v897 = vrot.slane %v896, 1
        %v898 = vadd.f32 %v896, %v897
        %v899 = vmax.f32 %v635, %v655
        %v900 = vmax.f32 %v640, %v660
        %v901 = vmax.f32 %v645, %v665
        %v902 = vmax.f32 %v650, %v670
        %v903 = vmax.f32 %v899, %v675
        %v904 = vmax.f32 %v900, %v680
        %v905 = vmax.f32 %v901, %v685
        %v906 = vmax.f32 %v902, %v690
        %v907 = vmax.f32 %v903, %v695
        %v908 = vmax.f32 %v904, %v700
        %v909 = vmax.f32 %v905, %v705
        %v910 = vmax.f32 %v906, %v710
        %v911 = vmax.f32 %v907, %v715
        %v912 = vmax.f32 %v908, %v720
        %v913 = vmax.f32 %v909, %v725
        %v914 = vmax.f32 %v910, %v730
        %v915 = vmax.f32 %v911, %v735
        %v916 = vmax.f32 %v912, %v740
        %v917 = vmax.f32 %v913, %v745
        %v918 = vmax.f32 %v914, %v750
        %v919 = vmax.f32 %v915, %v755
        %v920 = vmax.f32 %v916, %v760
        %v921 = vmax.f32 %v917, %v765
        %v922 = vmax.f32 %v918, %v770
        %v923 = vmax.f32 %v919, %v775
        %v924 = vmax.f32 %v920, %v780
        %v925 = vmax.f32 %v921, %v785
        %v926 = vmax.f32 %v922, %v790
        %v927 = vmax.f32 %v923, %v924
        %v928 = vmax.f32 %v925, %v926
        %v929 = vmax.f32 %v927, %v928
        %v930 = vrot.slane %v929, 4
        %v931 = vmax.f32 %v929, %v930
        %v932 = vrot.slane %v931, 2
        %v933 = vmax.f32 %v931, %v932
        %v934 = vrot.slane %v933, 1
        %v935 = vmax.f32 %v933, %v934
        %v936 = vmin.f32 %v635, %v655
        %v937 = vmin.f32 %v640, %v660
        %v938 = vmin.f32 %v645, %v665
        %v939 = vmin.f32 %v650, %v670
        %v940 = vmin.f32 %v936, %v675
        %v941 = vmin.f32 %v937, %v680
        %v942 = vmin.f32 %v938, %v685
        %v943 = vmin.f32 %v939, %v690
        %v944 = vmin.f32 %v940, %v695
        %v945 = vmin.f32 %v941, %v700
        %v946 = vmin.f32 %v942, %v705
        %v947 = vmin.f32 %v943, %v710
        %v948 = vmin.f32 %v944, %v715
        %v949 = vmin.f32 %v945, %v720
        %v950 = vmin.f32 %v946, %v725
        %v951 = vmin.f32 %v947, %v730
        %v952 = vmin.f32 %v948, %v735
        %v953 = vmin.f32 %v949, %v740
        %v954 = vmin.f32 %v950, %v745
        %v955 = vmin.f32 %v951, %v750
        %v956 = vmin.f32 %v952, %v755
        %v957 = vmin.f32 %v953, %v760
        %v958 = vmin.f32 %v954, %v765
        %v959 = vmin.f32 %v955, %v770
        %v960 = vmin.f32 %v956, %v775
        %v961 = vmin.f32 %v957, %v780
        %v962 = vmin.f32 %v958, %v785
        %v963 = vmin.f32 %v959, %v790
        %v964 = vmin.f32 %v960, %v961
        %v965 = vmin.f32 %v962, %v963
        %v966 = vmin.f32 %v964, %v965
        %v967 = vrot.slane %v966, 4
        %v968 = vmin.f32 %v966, %v967
        %v969 = vrot.slane %v968, 2
        %v970 = vmin.f32 %v968, %v969
        %v971 = vrot.slane %v970, 1
        %v972 = vmin.f32 %v970, %v971
        %v973 = vmul.f32 %v829, 0.00390625
        %v974 = vmul.f32 %v829, %v973
        %v975 = vsub.f32 %v898, %v974
        %v976 = vmul.f32 %v975, 0.003921569
        %p977 = scmp.eq.s32.totalorder %s32, 0
        // Predicated region
        $region57: #{tpu_custom_call.1} parent=47 // pred_check
          %p978 = pneg %p977
        $region58: #{tpu_custom_call.1} parent=47 // pred_check_branch
          %980 = sbr.rel (%p978) target = $region60
        $region59: #{tpu_custom_call.1} parent=47 // pred_region
          %s981 = sshra.s32 %s330, 7
          %s982 = sand.u32 %s330, 127
          %s983 = smul.addr %s981, 8
          %s984 = scalar_lea.vmem [#allocation3], %s983
          %985 = vst [vmem:[%s984] sm:$0x1] %v973
          %986 = vst [vmem:[%s984 + $0x1] sm:$0x1] %v976
          %987 = vst [vmem:[%s984 + $0x2] sm:$0x1] %v935
          %988 = vst [vmem:[%s984 + $0x3] sm:$0x1] %v972
        $region60: #{tpu_custom_call.1} parent=47 // pred_fallthru
          _
        %p989 = scmp.eq.s32.totalorder %s32, 1
        // Predicated region
        $region61: #{tpu_custom_call.1} parent=47 // pred_check
          %p990 = pneg %p989
        $region62: #{tpu_custom_call.1} parent=47 // pred_check_branch
          %992 = sbr.rel (%p990) target = $region64
        $region63: #{tpu_custom_call.1} parent=47 // pred_region
          %s993 = sshra.s32 %s330, 7
          %s994 = sand.u32 %s330, 127
          %s995 = smul.addr %s993, 8
          %s996 = scalar_lea.vmem [#allocation3], %s995
          %997 = vst [vmem:[%s996 + $0x4] sm:$0x1] %v973
          %998 = vst [vmem:[%s996 + $0x5] sm:$0x1] %v976
          %999 = vst [vmem:[%s996 + $0x6] sm:$0x1] %v935
          %1000 = vst [vmem:[%s996 + $0x7] sm:$0x1] %v972
        $region64: #{tpu_custom_call.1} parent=47 // pred_fallthru
          _
        %p1001 = scmp.eq.s32.totalorder %s32, 2
        // Predicated region
        $region65: #{tpu_custom_call.1} parent=47 // pred_check
          %p1002 = pneg %p1001
        $region66: #{tpu_custom_call.1} parent=47 // pred_check_branch
          %1004 = sbr.rel (%p1002) target = $region68
        $region67: #{tpu_custom_call.1} parent=47 // pred_region
          %s1005 = sshra.s32 %s330, 7
          %s1006 = sand.u32 %s330, 127
          %s1007 = smul.addr %s1005, 8
          %s1008 = scalar_lea.vmem [#allocation3], %s1007
          %1009 = vst [vmem:[%s1008 + $0x10] sm:$0x1] %v973
          %1010 = vst [vmem:[%s1008 + $0x11] sm:$0x1] %v976
          %1011 = vst [vmem:[%s1008 + $0x12] sm:$0x1] %v935
          %1012 = vst [vmem:[%s1008 + $0x13] sm:$0x1] %v972
        $region68: #{tpu_custom_call.1} parent=47 // pred_fallthru
          _
        %p1013 = scmp.eq.s32.totalorder %s32, 3
        // Predicated region
        $region69: #{tpu_custom_call.1} parent=47 // pred_check
          %p1014 = pneg %p1013
        $region70: #{tpu_custom_call.1} parent=47 // pred_check_branch
          %1016 = sbr.rel (%p1014) target = $region72
        $region71: #{tpu_custom_call.1} parent=47 // pred_region
          %s1017 = sshra.s32 %s330, 7
          %s1018 = sand.u32 %s330, 127
          %s1019 = smul.addr %s1017, 8
          %s1020 = scalar_lea.vmem [#allocation3], %s1019
          %1021 = vst [vmem:[%s1020 + $0x14] sm:$0x1] %v973
          %1022 = vst [vmem:[%s1020 + $0x15] sm:$0x1] %v976
          %1023 = vst [vmem:[%s1020 + $0x16] sm:$0x1] %v935
          %1024 = vst [vmem:[%s1020 + $0x17] sm:$0x1] %v972
          %v1025 = vld [vmem:[%s1020] sm:$0xff]
          %v1026 = vld [vmem:[%s1020 + $0x10] sm:$0xff]
          %v1027 = vld [vmem:[%s1] sm:$0xff]
          %v1028 = vld [vmem:[%s1 + $0x8] sm:$0xff]
          %v1029 = vld [vmem:[%s2] sm:$0xff]
          %v1030 = vld [vmem:[%s2 + $0x8] sm:$0xff]
          %1032 = vset.pattern.permute.xlu0 0
          %1033 = vperm.xlu0 %1032, %v1029
          %v1034 = vpop.permute.xlu0 %1033
          %1037 = vset.pattern.permute.xlu0 0
          %1038 = vperm.xlu0 %1037, %v1030
          %v1039 = vpop.permute.xlu0 %1038
          %vm1041 = vcmask 130048
          %v1043 = vsel %vm1041, %v1027, 0
          %v1046 = vsel %vm1041, %v1028, 0
          %1048 = vmatprep.subr.mxu0 0.0
          %1049 = vmatpush1.msra.mxu0 %v1025
          %1050 = vmatprep.subr.mxu0 0.0
          %1051 = vmatpush1.msra.mxu0 %v1026
          %1052 = vmatprep.subr.mxu0 0.0
          %1053 = vmatpush1.msra.mxu0 0.0
          %1054 = vmatprep.subr.mxu0 0.0
          %1055 = vmatpush1.msra.mxu0 0.0
          %1056 = vmatprep.subr.mxu0 0.0
          %1057 = vmatpush1.msra.mxu0 0.0
          %1058 = vmatprep.subr.mxu0 0.0
          %1059 = vmatpush1.msra.mxu0 0.0
          %1060 = vmatprep.subr.mxu0 0.0
          %1061 = vmatpush1.msra.mxu0 0.0
          %1062 = vmatprep.subr.mxu0 0.0
          %1063 = vmatpush1.msra.mxu0 0.0
          %1064 = vmatprep.subr.mxu0 0.0
          %1065 = vmatpush1.msra.mxu0 0.0
          %1066 = vmatprep.subr.mxu0 0.0
          %1067 = vmatpush1.msra.mxu0 0.0
          %1068 = vmatprep.subr.mxu0 0.0
          %1069 = vmatpush1.msra.mxu0 0.0
          %1070 = vmatprep.subr.mxu0 0.0
          %1071 = vmatpush1.msra.mxu0 0.0
          %1072 = vmatprep.subr.mxu0 0.0
          %1073 = vmatpush1.msra.mxu0 0.0
          %1074 = vmatprep.subr.mxu0 0.0
          %1075 = vmatpush1.msra.mxu0 0.0
          %1076 = vmatprep.subr.mxu0 0.0
          %1077 = vmatpush1.msra.mxu0 0.0
          %1078 = vmatprep.subr.mxu0 0.0
          %1079 = vmatpush1.msra.mxu0 0.0
          %1080 = vmatprep.subr.mxu0 0.0
          %1081 = vmatpush1.msra.mxu0 0.0
          %1082 = vmatprep.subr.mxu0 0.0
          %1083 = vmatpush1.msra.mxu0 0.0
          %1084 = vmatprep.subr.mxu0 0.0
          %1085 = vmatpush1.msra.mxu0 0.0
          %1086 = vmatprep.subr.mxu0 0.0
          %1087 = vmatpush1.msra.mxu0 0.0
          %1088 = vmatprep.subr.mxu0 0.0
          %1089 = vmatpush1.msra.mxu0 0.0
          %1090 = vmatprep.subr.mxu0 0.0
          %1091 = vmatpush1.msra.mxu0 0.0
          %1092 = vmatprep.subr.mxu0 0.0
          %1093 = vmatpush1.msra.mxu0 0.0
          %1094 = vmatprep.subr.mxu0 0.0
          %1095 = vmatpush1.msra.mxu0 0.0
          %1096 = vmatprep.subr.mxu0 0.0
          %1097 = vmatpush1.msra.mxu0 0.0
          %1098 = vmatprep.subr.mxu0 0.0
          %1099 = vmatpush1.msra.mxu0 0.0
          %1100 = vmatprep.subr.mxu0 0.0
          %1101 = vmatpush1.msra.mxu0 0.0
          %1102 = vmatprep.subr.mxu0 0.0
          %1103 = vmatpush1.msra.mxu0 0.0
          %1104 = vmatprep.subr.mxu0 0.0
          %1105 = vmatpush1.msra.mxu0 0.0
          %1106 = vmatprep.subr.mxu0 0.0
          %1107 = vmatpush1.msra.mxu0 0.0
          %1108 = vmatprep.subr.mxu0 0.0
          %1109 = vmatpush1.msra.mxu0 0.0
          %1110 = vmatprep.subr.mxu0 0.0
          %1111 = vmatpush1.msra.mxu0 0.0
          %1112 = vmatprep.mubr.f32.mxu0 0.0
          %1113 = vmatmul.mubr.f32.gmra.mrb[0].mxu0 %v1043
          %v1114 = vpop.f32.mrb[0].mxu0
          %v1115 = vadd.f32 %v1034, %v1114
          %v1116 = vpop.f32.mrb[0].mxu0
          %1117 = vmatprep.mubr.f32.mxu0 0.0
          %1118 = vmatmul.mubr.f32.gmra.mrb[0].mxu0 %v1046
          %v1119 = vpop.f32.mrb[0].mxu0
          %v1120 = vadd.f32 %v1039, %v1119
          %v1121 = vpop.f32.mrb[0].mxu0
          %1122 = vdwg.mxu0
          %v1123 = vmax.f32 %v1115, 0.0
          %v1124 = vmax.f32 %v1120, 0.0
          %v1125 = vld [vmem:[%s3] sm:$0xff]
          %v1126 = vld [vmem:[%s3 + $0x8] sm:$0xff]
          %v1127 = vld [vmem:[%s3 + $0x10] sm:$0xff]
          %v1128 = vld [vmem:[%s3 + $0x18] sm:$0xff]
          %v1129 = vld [vmem:[%s3 + $0x20] sm:$0xff]
          %v1130 = vld [vmem:[%s3 + $0x28] sm:$0xff]
          %v1131 = vld [vmem:[%s3 + $0x30] sm:$0xff]
          %v1132 = vld [vmem:[%s3 + $0x38] sm:$0xff]
          %v1133 = vld [vmem:[%s4] sm:$0xff]
          %v1134 = vld [vmem:[%s4 + $0x8] sm:$0xff]
          %v1135 = vld [vmem:[%s4 + $0x10] sm:$0xff]
          %v1136 = vld [vmem:[%s4 + $0x18] sm:$0xff]
          %v1137 = vld [vmem:[%s4 + $0x20] sm:$0xff]
          %v1138 = vld [vmem:[%s4 + $0x28] sm:$0xff]
          %v1139 = vld [vmem:[%s4 + $0x30] sm:$0xff]
          %v1140 = vld [vmem:[%s4 + $0x38] sm:$0xff]
          %1142 = vset.pattern.permute.xlu0 0
          %1143 = vperm.xlu0 %1142, %v1133
          %v1144 = vpop.permute.xlu0 %1143
          %1147 = vset.pattern.permute.xlu0 0
          %1148 = vperm.xlu0 %1147, %v1134
          %v1149 = vpop.permute.xlu0 %1148
          %1152 = vset.pattern.permute.xlu0 0
          %1153 = vperm.xlu0 %1152, %v1135
          %v1154 = vpop.permute.xlu0 %1153
          %1157 = vset.pattern.permute.xlu0 0
          %1158 = vperm.xlu0 %1157, %v1136
          %v1159 = vpop.permute.xlu0 %1158
          %1162 = vset.pattern.permute.xlu0 0
          %1163 = vperm.xlu0 %1162, %v1137
          %v1164 = vpop.permute.xlu0 %1163
          %1167 = vset.pattern.permute.xlu0 0
          %1168 = vperm.xlu0 %1167, %v1138
          %v1169 = vpop.permute.xlu0 %1168
          %1172 = vset.pattern.permute.xlu0 0
          %1173 = vperm.xlu0 %1172, %v1139
          %v1174 = vpop.permute.xlu0 %1173
          %1177 = vset.pattern.permute.xlu0 0
          %1178 = vperm.xlu0 %1177, %v1140
          %v1179 = vpop.permute.xlu0 %1178
          %v1182 = vsel %vm1041, %v1125, 0
          %v1185 = vsel %vm1041, %v1126, 0
          %v1188 = vsel %vm1041, %v1127, 0
          %v1191 = vsel %vm1041, %v1128, 0
          %v1194 = vsel %vm1041, %v1129, 0
          %v1197 = vsel %vm1041, %v1130, 0
          %v1200 = vsel %vm1041, %v1131, 0
          %v1203 = vsel %vm1041, %v1132, 0
          %1205 = vmatprep.subr.mxu0 0.0
          %1206 = vmatpush1.msra.mxu0 %v1123
          %1207 = vmatprep.subr.mxu0 0.0
          %1208 = vmatpush1.msra.mxu0 %v1124
          %1209 = vmatprep.subr.mxu0 0.0
          %1210 = vmatpush1.msra.mxu0 0.0
          %1211 = vmatprep.subr.mxu0 0.0
          %1212 = vmatpush1.msra.mxu0 0.0
          %1213 = vmatprep.subr.mxu0 0.0
          %1214 = vmatpush1.msra.mxu0 0.0
          %1215 = vmatprep.subr.mxu0 0.0
          %1216 = vmatpush1.msra.mxu0 0.0
          %1217 = vmatprep.subr.mxu0 0.0
          %1218 = vmatpush1.msra.mxu0 0.0
          %1219 = vmatprep.subr.mxu0 0.0
          %1220 = vmatpush1.msra.mxu0 0.0
          %1221 = vmatprep.subr.mxu0 0.0
          %1222 = vmatpush1.msra.mxu0 0.0
          %1223 = vmatprep.subr.mxu0 0.0
          %1224 = vmatpush1.msra.mxu0 0.0
          %1225 = vmatprep.subr.mxu0 0.0
          %1226 = vmatpush1.msra.mxu0 0.0
          %1227 = vmatprep.subr.mxu0 0.0
          %1228 = vmatpush1.msra.mxu0 0.0
          %1229 = vmatprep.subr.mxu0 0.0
          %1230 = vmatpush1.msra.mxu0 0.0
          %1231 = vmatprep.subr.mxu0 0.0
          %1232 = vmatpush1.msra.mxu0 0.0
          %1233 = vmatprep.subr.mxu0 0.0
          %1234 = vmatpush1.msra.mxu0 0.0
          %1235 = vmatprep.subr.mxu0 0.0
          %1236 = vmatpush1.msra.mxu0 0.0
          %1237 = vmatprep.subr.mxu0 0.0
          %1238 = vmatpush1.msra.mxu0 0.0
          %1239 = vmatprep.subr.mxu0 0.0
          %1240 = vmatpush1.msra.mxu0 0.0
          %1241 = vmatprep.subr.mxu0 0.0
          %1242 = vmatpush1.msra.mxu0 0.0
          %1243 = vmatprep.subr.mxu0 0.0
          %1244 = vmatpush1.msra.mxu0 0.0
          %1245 = vmatprep.subr.mxu0 0.0
          %1246 = vmatpush1.msra.mxu0 0.0
          %1247 = vmatprep.subr.mxu0 0.0
          %1248 = vmatpush1.msra.mxu0 0.0
          %1249 = vmatprep.subr.mxu0 0.0
          %1250 = vmatpush1.msra.mxu0 0.0
          %1251 = vmatprep.subr.mxu0 0.0
          %1252 = vmatpush1.msra.mxu0 0.0
          %1253 = vmatprep.subr.mxu0 0.0
          %1254 = vmatpush1.msra.mxu0 0.0
          %1255 = vmatprep.subr.mxu0 0.0
          %1256 = vmatpush1.msra.mxu0 0.0
          %1257 = vmatprep.subr.mxu0 0.0
          %1258 = vmatpush1.msra.mxu0 0.0
          %1259 = vmatprep.subr.mxu0 0.0
          %1260 = vmatpush1.msra.mxu0 0.0
          %1261 = vmatprep.subr.mxu0 0.0
          %1262 = vmatpush1.msra.mxu0 0.0
          %1263 = vmatprep.subr.mxu0 0.0
          %1264 = vmatpush1.msra.mxu0 0.0
          %1265 = vmatprep.subr.mxu0 0.0
          %1266 = vmatpush1.msra.mxu0 0.0
          %1267 = vmatprep.subr.mxu0 0.0
          %1268 = vmatpush1.msra.mxu0 0.0
          %1269 = vmatprep.mubr.f32.mxu0 0.0
          %1270 = vmatmul.mubr.f32.gmra.mrb[0].mxu0 %v1182
          %v1271 = vpop.f32.mrb[0].mxu0
          %v1272 = vadd.f32 %v1144, %v1271
          %v1273 = vpop.f32.mrb[0].mxu0
          %1274 = vmatprep.mubr.f32.mxu0 0.0
          %1275 = vmatmul.mubr.f32.gmra.mrb[0].mxu0 %v1185
          %v1276 = vpop.f32.mrb[0].mxu0
          %v1277 = vadd.f32 %v1149, %v1276
          %v1278 = vpop.f32.mrb[0].mxu0
          %1279 = vmatprep.mubr.f32.mxu0 0.0
          %1280 = vmatmul.mubr.f32.gmra.mrb[0].mxu0 %v1188
          %v1281 = vpop.f32.mrb[0].mxu0
          %v1282 = vadd.f32 %v1154, %v1281
          %v1283 = vpop.f32.mrb[0].mxu0
          %1284 = vmatprep.mubr.f32.mxu0 0.0
          %1285 = vmatmul.mubr.f32.gmra.mrb[0].mxu0 %v1191
          %v1286 = vpop.f32.mrb[0].mxu0
          %v1287 = vadd.f32 %v1159, %v1286
          %v1288 = vpop.f32.mrb[0].mxu0
          %1289 = vmatprep.mubr.f32.mxu0 0.0
          %1290 = vmatmul.mubr.f32.gmra.mrb[0].mxu0 %v1194
          %v1291 = vpop.f32.mrb[0].mxu0
          %v1292 = vadd.f32 %v1164, %v1291
          %v1293 = vpop.f32.mrb[0].mxu0
          %1294 = vmatprep.mubr.f32.mxu0 0.0
          %1295 = vmatmul.mubr.f32.gmra.mrb[0].mxu0 %v1197
          %v1296 = vpop.f32.mrb[0].mxu0
          %v1297 = vadd.f32 %v1169, %v1296
          %v1298 = vpop.f32.mrb[0].mxu0
          %1299 = vmatprep.mubr.f32.mxu0 0.0
          %1300 = vmatmul.mubr.f32.gmra.mrb[0].mxu0 %v1200
          %v1301 = vpop.f32.mrb[0].mxu0
          %v1302 = vadd.f32 %v1174, %v1301
          %v1303 = vpop.f32.mrb[0].mxu0
          %1304 = vmatprep.mubr.f32.mxu0 0.0
          %1305 = vmatmul.mubr.f32.gmra.mrb[0].mxu0 %v1203
          %v1306 = vpop.f32.mrb[0].mxu0
          %v1307 = vadd.f32 %v1179, %v1306
          %v1308 = vpop.f32.mrb[0].mxu0
          %1309 = vdwg.mxu0
          %v1310 = vmax.f32 %v1272, 0.0
          %v1311 = vmax.f32 %v1277, 0.0
          %v1312 = vmax.f32 %v1282, 0.0
          %v1313 = vmax.f32 %v1287, 0.0
          %v1314 = vmax.f32 %v1292, 0.0
          %v1315 = vmax.f32 %v1297, 0.0
          %v1316 = vmax.f32 %v1302, 0.0
          %v1317 = vmax.f32 %v1307, 0.0
          %v1318 = vld [vmem:[%s5] sm:$0xf]
          %v1319 = vld [vmem:[%s6] sm:$0xf]
          %1321 = vset.pattern.permute.xlu0 0
          %1322 = vperm.xlu0 %1321, %v1319
          %v1323 = vpop.permute.xlu0 %1322
          %vm1325 = vcmask 523264
          %v1327 = vsel %vm1325, %v1318, 0
          %1329 = vmatprep.subr.mxu0 0.0
          %1330 = vmatpush1.msra.mxu0 %v1310
          %1331 = vmatprep.subr.mxu0 0.0
          %1332 = vmatpush1.msra.mxu0 %v1311
          %1333 = vmatprep.subr.mxu0 0.0
          %1334 = vmatpush1.msra.mxu0 %v1312
          %1335 = vmatprep.subr.mxu0 0.0
          %1336 = vmatpush1.msra.mxu0 %v1313
          %1337 = vmatprep.subr.mxu0 0.0
          %1338 = vmatpush1.msra.mxu0 %v1314
          %1339 = vmatprep.subr.mxu0 0.0
          %1340 = vmatpush1.msra.mxu0 %v1315
          %1341 = vmatprep.subr.mxu0 0.0
          %1342 = vmatpush1.msra.mxu0 %v1316
          %1343 = vmatprep.subr.mxu0 0.0
          %1344 = vmatpush1.msra.mxu0 %v1317
          %1345 = vmatprep.subr.mxu0 0.0
          %1346 = vmatpush1.msra.mxu0 0.0
          %1347 = vmatprep.subr.mxu0 0.0
          %1348 = vmatpush1.msra.mxu0 0.0
          %1349 = vmatprep.subr.mxu0 0.0
          %1350 = vmatpush1.msra.mxu0 0.0
          %1351 = vmatprep.subr.mxu0 0.0
          %1352 = vmatpush1.msra.mxu0 0.0
          %1353 = vmatprep.subr.mxu0 0.0
          %1354 = vmatpush1.msra.mxu0 0.0
          %1355 = vmatprep.subr.mxu0 0.0
          %1356 = vmatpush1.msra.mxu0 0.0
          %1357 = vmatprep.subr.mxu0 0.0
          %1358 = vmatpush1.msra.mxu0 0.0
          %1359 = vmatprep.subr.mxu0 0.0
          %1360 = vmatpush1.msra.mxu0 0.0
          %1361 = vmatprep.subr.mxu0 0.0
          %1362 = vmatpush1.msra.mxu0 0.0
          %1363 = vmatprep.subr.mxu0 0.0
          %1364 = vmatpush1.msra.mxu0 0.0
          %1365 = vmatprep.subr.mxu0 0.0
          %1366 = vmatpush1.msra.mxu0 0.0
          %1367 = vmatprep.subr.mxu0 0.0
          %1368 = vmatpush1.msra.mxu0 0.0
          %1369 = vmatprep.subr.mxu0 0.0
          %1370 = vmatpush1.msra.mxu0 0.0
          %1371 = vmatprep.subr.mxu0 0.0
          %1372 = vmatpush1.msra.mxu0 0.0
          %1373 = vmatprep.subr.mxu0 0.0
          %1374 = vmatpush1.msra.mxu0 0.0
          %1375 = vmatprep.subr.mxu0 0.0
          %1376 = vmatpush1.msra.mxu0 0.0
          %1377 = vmatprep.subr.mxu0 0.0
          %1378 = vmatpush1.msra.mxu0 0.0
          %1379 = vmatprep.subr.mxu0 0.0
          %1380 = vmatpush1.msra.mxu0 0.0
          %1381 = vmatprep.subr.mxu0 0.0
          %1382 = vmatpush1.msra.mxu0 0.0
          %1383 = vmatprep.subr.mxu0 0.0
          %1384 = vmatpush1.msra.mxu0 0.0
          %1385 = vmatprep.subr.mxu0 0.0
          %1386 = vmatpush1.msra.mxu0 0.0
          %1387 = vmatprep.subr.mxu0 0.0
          %1388 = vmatpush1.msra.mxu0 0.0
          %1389 = vmatprep.subr.mxu0 0.0
          %1390 = vmatpush1.msra.mxu0 0.0
          %1391 = vmatprep.subr.mxu0 0.0
          %1392 = vmatpush1.msra.mxu0 0.0
          %1393 = vmatprep.mubr.f32.mxu0 0.0
          %1394 = vmatmul.mubr.f32.gmra.mrb[0].mxu0 %v1327
          %v1395 = vpop.f32.mrb[0].mxu0
          %v1396 = vadd.f32 %v1323, %v1395
          %v1397 = vpop.f32.mrb[0].mxu0
          %1398 = vdwg.mxu0
          %vm1399 = vcmask 1043456
          %v1400 = vsel %vm1399, %v1396, -inf
          %v1401 = vrot.slane %v1400, 4
          %v1402 = vmax.f32 %v1400, %v1401
          %v1403 = vrot.slane %v1402, 2
          %v1404 = vmax.f32 %v1402, %v1403
          %v1405 = vrot.slane %v1404, 1
          %v1406 = vmax.f32 %v1404, %v1405
          %v1407 = vsub.f32 %v1396, %v1406
          %v1408 = vmul.f32 %v1407, 1.442695
          %v1409 = vpow.pop %v1408
          %v1410 = vsel %vm1399, %v1409, 0.0
          %v1411 = vrot.slane %v1410, 4
          %v1412 = vadd.f32 %v1410, %v1411
          %v1413 = vrot.slane %v1412, 2
          %v1414 = vadd.f32 %v1412, %v1413
          %v1415 = vrot.slane %v1414, 1
          %v1416 = vadd.f32 %v1414, %v1415
          %v1417 = vrcp.pop %v1416
          %v1418 = vmul.f32 %v1409, %v1417
          %s1419 = smul.addr %s1017, 4
          %s1420 = scalar_lea.vmem %s328, %s1419 [#allocation7]
          %1421 = vst [vmem:[%s1420] sm:$0xf] %v1418
        $region72: #{tpu_custom_call.1} parent=47 // pred_fallthru
          _
        %s1422 = sand.u32 %s214, 1
        %s1423 = scalar_lea.sflag [#allocation6], %s1422
        %s1424 = sand.u32 %s214, 1
        %s1425 = smul.addr %s1424, 8
        %s1426 = scalar_lea.vmem [#allocation7], %s1425
        // Predicated region
        $region73: #{tpu_custom_call.1} parent=47 // pred_check
          %p1427 = pneg %p224
        $region74: #{tpu_custom_call.1} parent=47 // pred_check_branch
          %1429 = sbr.rel (%p1427) target = $region76
        $region75: #{tpu_custom_call.1} parent=47 // pred_region
          %s1430 = smul.u32 2, %s30
          %s1432 = ssub.s32 128, 128
          %1433 = vsyncadd %s1423, %s1432
          %s1434 = smul.addr %s31, 2
          %s1435 = sadd.s32 %s1430, %s1434
          %s1436 = smul.addr %s1435, 64
          %s1437 = scalar_lea.hbm %s7, %s1436
          %s1439 = sshll.u32 %s1426, 4
          %s1440 = int_to_ptr.vmem [resolvable:$true] %s1439
          %1442 = dma.vmem_to_hbm [thread:$0]  %s1440, 128, %s1437, %s1423
        $region76: #{tpu_custom_call.1} parent=47 // pred_fallthru
          _
      $region48: #{tpu_custom_call.1} parent=5 // pred_fallthru
        _
      %p1443 = scmp.le.s32.totalorder 2, %s19
      // Predicated region
      $region77: #{tpu_custom_call.1} parent=5 // pred_check
        %p1444 = pneg %p1443
      $region78: #{tpu_custom_call.1} parent=5 // pred_check_branch
        %1446 = sbr.rel (%p1444) target = $region80
      $region79: #{tpu_custom_call.1} parent=5 // pred_region
        %s1447 = ssub.s32 %s19, 2
        // Predicated region
        $region81: #{tpu_custom_call.1} parent=79 // pred_check
          %p1448 = pneg %p230
        $region82: #{tpu_custom_call.1} parent=79 // pred_check_branch
          %1450 = sbr.rel (%p1448) target = $region84
        $region83: #{tpu_custom_call.1} parent=79 // pred_region
          %s1451 = sand.u32 %s215, 1
          %s1452 = scalar_lea.sflag [#allocation6], %s1451
          %s1453 = sand.u32 %s215, 1
          %s1454 = smul.addr %s1453, 8
          %s1455 = scalar_lea.vmem [#allocation7], %s1454
          %1456 = dma.done %s1452, 128
        $region84: #{tpu_custom_call.1} parent=79 // pred_fallthru
          _
      $region80: #{tpu_custom_call.1} parent=5 // pred_fallthru
        _
    $region6: #{tpu_custom_call.1} parent=1 // loop_footer
      %s23 = sadd.s32 1, %s19
    $region7: #{tpu_custom_call.1} parent=1 // loop_footer_branch
      %18 = sbr.rel target = $region3
    $region8: #{tpu_custom_call.1} parent=1 // loop_exit
      _
    %1457 = vsyncpa [#allocation5], 1
    %s1458 = scalar_lea.sflag [#allocation5], 1
    %1459 = vsyncpa %s1458, 1
    %1460 = vsyncpa [#allocation6], 1
    %s1461 = scalar_lea.sflag [#allocation6], 1
    %1462 = vsyncpa %s1461, 1

</llo_original>
